<compile_context>
chip_gen: v5e
topology: v5e:2x2
jax: 0.10.0
libtpu: 0.0.40
codegen_flags: <defaults>
</compile_context>

<pallas_src>
import functools
import math

import jax
import jax.numpy as jnp
from jax.experimental import pallas as pl
from jax.experimental.pallas import tpu as pltpu


# ============================================================================
# Encoder kernel: one bidirectional GRU layer (both directions, full sequence)
# ============================================================================
def _bigru_layer_kernel(gx_ref, mask_ref, whh_ref, bhh_ref, h0_ref,
                        out_ref, hN_ref):
    """Grid axis 0 = direction (0 forward, 1 backward).

    gx_ref:   (T, B, 3H)  precomputed x_t @ W_ih + b_ih   (gate order r, z, n)
    mask_ref: (T, B, 1)   1.0 where t < length[b] else 0.0
    whh_ref:  (H, 3H)     fused hidden->gates weight
    bhh_ref:  (1, 3H), h0_ref: (B, H)
    out_ref:  (T, B, H)   per-step outputs (exact 0 at padded positions)
    hN_ref:   (B, H)      final hidden state of this direction
    """
    d = pl.program_id(0)
    T = out_ref.shape[0]
    H = hN_ref.shape[-1]
    whh = whh_ref[...]
    bhh = bhh_ref[...]

    def step(i, h_prev):
        # Forward walks t = 0..T-1, backward walks t = T-1..0.  Because the
        # length mask freezes h on padded steps, reverse iteration reproduces
        # the packed-sequence backward direction exactly (no data reversal).
        t = jnp.where(d == 0, i, T - 1 - i)
        gx = gx_ref[t]                       # (B, 3H)
        m = mask_ref[t]                      # (B, 1)
        gh = jnp.dot(h_prev, whh, preferred_element_type=jnp.float32) + bhh
        r = jax.nn.sigmoid(gx[:, 0:H] + gh[:, 0:H])
        z = jax.nn.sigmoid(gx[:, H:2 * H] + gh[:, H:2 * H])
        n = jnp.tanh(gx[:, 2 * H:] + r * gh[:, 2 * H:])   # b_hn inside gh, like PyTorch
        h_new = (1.0 - z) * n + z * h_prev
        mh = m * h_new
        out_ref[t] = mh                      # pad_packed pads with exact zeros
        return mh + (1.0 - m) * h_prev       # hidden only advances on valid steps

    hN_ref[...] = jax.lax.fori_loop(0, T, step, h0_ref[...], unroll=True)


def bigru_layer(gx, mask3, w_hh, b_hh, h0):
    """gx: (2,T,B,3H)  mask3: (T,B,1)  w_hh: (2,H,3H)  b_hh: (2,1,3H)  h0: (2,B,H)."""
    _, T, B, G = gx.shape
    H = G // 3
    grid_spec = pltpu.PrefetchScalarGridSpec(
        num_scalar_prefetch=0,
        grid=(2,),                                          # direction axis
        in_specs=[
            pl.BlockSpec((None, T, B, G), lambda d: (d, 0, 0, 0)),   # gates_x
            pl.BlockSpec((T, B, 1), lambda d: (0, 0, 0)),            # mask (shared)
            pl.BlockSpec((None, H, G), lambda d: (d, 0, 0)),         # W_hh
            pl.BlockSpec((None, 1, G), lambda d: (d, 0, 0)),         # b_hh
            pl.BlockSpec((None, B, H), lambda d: (d, 0, 0)),         # h0
        ],
        out_specs=(
            pl.BlockSpec((None, T, B, H), lambda d: (d, 0, 0, 0)),   # outputs
            pl.BlockSpec((None, B, H), lambda d: (d, 0, 0)),         # final hidden
        ),
    )
    return pl.pallas_call(
        _bigru_layer_kernel,
        out_shape=(jax.ShapeDtypeStruct((2, T, B, H), jnp.float32),
                   jax.ShapeDtypeStruct((2, B, H), jnp.float32)),
        grid_spec=grid_spec,
        compiler_params=pltpu.CompilerParams(
            dimension_semantics=("parallel",)),   # fwd/bwd on separate cores (v7x)
    )(gx, mask3, w_hh, b_hh, h0)


def encoder_forward(enc_params, input_ids, input_lengths, hidden=None):
    """Equivalent of Encoder.forward (eval): returns (outputs, hidden_stack)."""
    emb = jnp.take(enc_params["embedding"], input_ids, axis=0)      # (T, B, H)
    T, B, H = emb.shape
    n_layers = len(enc_params["layers"])

    mask3 = (jnp.arange(T)[:, None] < input_lengths[None, :]
             ).astype(jnp.float32)[:, :, None]                      # (T, B, 1)

    if hidden is None:
        hidden = jnp.zeros((2 * n_layers, B, H), jnp.float32)

    out_stack = emb[None]                     # (e, T, B, H); e = #input halves
    hiddens = []
    for l, lp in enumerate(enc_params["layers"]):
        e_in = out_stack.shape[0]
        wih = lp["w_ih"].reshape(2, e_in, H, 3 * H)
        # Hoisted input projection: one batched GEMM for all timesteps & gates,
        # consuming the (fwd, bwd) halves directly (no concatenate needed).
        gx = jnp.einsum("etbh,deho->dtbo", out_stack, wih) + lp["b_ih"][:, None]
        h0 = hidden[2 * l:2 * l + 2]          # (2, B, H): fwd, bwd
        out_stack, h_last = bigru_layer(gx, mask3, lp["w_hh"], lp["b_hh"], h0)
        hiddens.append(h_last)
        # TODO(synk): inter-layer dropout (p=0.1) omitted — eval/inference semantics.

    outputs = out_stack[0] + out_stack[1]     # sum of fwd/bwd output halves
    hidden_out = jnp.concatenate(hiddens, axis=0)   # [f0, b0, f1, b1, ...]
    return outputs, hidden_out


# ============================================================================
# Decoder kernel: full greedy decode loop (Luong dot-attention GRU decoder)
# ============================================================================
def _greedy_decode_kernel(enc_ref, h0_ref, emb_ref, wih_ref, whh_ref,
                          bih_ref, bhh_ref, wcat_ref, bcat_ref,
                          wout_ref, bout_ref, tok_ref, score_ref, *,
                          sos_token):
    V, H = emb_ref.shape
    n_layers = h0_ref.shape[0]
    max_len = tok_ref.shape[0]

    enc = enc_ref[...]                                 # (T, H) encoder outputs
    emb = emb_ref[...]                                 # (V, H)
    wcat = wcat_ref[...]
    bcat = bcat_ref[...]
    wout = wout_ref[...]
    bout = bout_ref[...]
    wihs = [wih_ref[l] for l in range(n_layers)]       # hoisted weight loads
    whhs = [whh_ref[l] for l in range(n_layers)]
    bihs = [bih_ref[l] for l in range(n_layers)]
    bhhs = [bhh_ref[l] for l in range(n_layers)]

    lane_iota = jax.lax.broadcasted_iota(jnp.int32, (1, V), 1)
    onehot0 = (lane_iota == sos_token).astype(jnp.float32)
    h_init = tuple(h0_ref[l] for l in range(n_layers))

    def step(i, carry):
        hs, onehot = carry
        # embedding lookup as one-hot matmul (MXU-friendly, no dynamic gather)
        x = jnp.dot(onehot, emb, preferred_element_type=jnp.float32)    # (1, H)
        new_hs = []
        for l in range(n_layers):            # unidirectional multi-layer GRU, one step
            h_prev = hs[l]
            gx = jnp.dot(x, wihs[l], preferred_element_type=jnp.float32) + bihs[l]
            gh = jnp.dot(h_prev, whhs[l], preferred_element_type=jnp.float32) + bhhs[l]
            r = jax.nn.sigmoid(gx[:, 0:H] + gh[:, 0:H])
            z = jax.nn.sigmoid(gx[:, H:2 * H] + gh[:, H:2 * H])
            n = jnp.tanh(gx[:, 2 * H:] + r * gh[:, 2 * H:])
            h_new = (1.0 - z) * n + z * h_prev
            new_hs.append(h_new)
            x = h_new
            # TODO(synk): decoder dropout omitted — eval/inference semantics.
        rnn_out = x                                                     # (1, H)

        # Luong "dot" attention over the encoder outputs.
        energy = jnp.sum(enc * rnn_out, axis=1, keepdims=True)          # (T, 1)
        e = jnp.exp(energy - jnp.max(energy, axis=0, keepdims=True))
        attn = e / jnp.sum(e, axis=0, keepdims=True)                    # (T, 1)
        context = jnp.sum(attn * enc, axis=0, keepdims=True)            # (1, H)

        cat_out = jnp.tanh(
            jnp.dot(rnn_out, wcat[0:H, :], preferred_element_type=jnp.float32)
            + jnp.dot(context, wcat[H:, :], preferred_element_type=jnp.float32)
            + bcat)                                                     # (1, H)
        logits = jnp.dot(cat_out, wout, preferred_element_type=jnp.float32) + bout  # (1, V)

        # softmax + greedy max (== torch.max(F.softmax(...), dim=1))
        lmax = jnp.max(logits, axis=1, keepdims=True)                   # (1, 1)
        denom = jnp.sum(jnp.exp(logits - lmax), axis=1, keepdims=True)  # (1, 1)
        score = 1.0 / denom                                             # max softmax prob
        idx = jnp.min(jnp.where(logits >= lmax, lane_iota, V),
                      axis=1, keepdims=True)                            # (1, 1) int32

        tok_ref[i] = idx
        score_ref[i] = score
        onehot_next = (lane_iota == idx).astype(jnp.float32)
        return tuple(new_hs), onehot_next

    jax.lax.fori_loop(0, max_len, step, (h_init, onehot0), unroll=True)


def greedy_decode(dec_params, enc_out, h0, max_length, sos_token):
    """enc_out: (T, H)   h0: (n_dec_layers, 1, H)   -> (tokens, scores)."""
    vmem = lambda: pl.BlockSpec(memory_space=pltpu.MemorySpace.VMEM)
    tokens, scores = pl.pallas_call(
        functools.partial(_greedy_decode_kernel, sos_token=sos_token),
        out_shape=(jax.ShapeDtypeStruct((max_length, 1, 1), jnp.int32),
                   jax.ShapeDtypeStruct((max_length, 1, 1), jnp.float32)),
        in_specs=[vmem() for _ in range(11)],
        out_specs=(vmem(), vmem()),
    )(enc_out, h0, dec_params["embedding"], dec_params["w_ih"],
      dec_params["w_hh"], dec_params["b_ih"], dec_params["b_hh"],
      dec_params["w_cat"], dec_params["b_cat"], dec_params["w_out"],
      dec_params["b_out"])
    return tokens[:, 0, 0], scores[:, 0, 0]


# ============================================================================
# Seq2Seq.forward equivalent
# ============================================================================
@functools.partial(jax.jit, static_argnames=("max_length", "sos_token"))
def seq2seq_forward(params, input_ids, input_lengths, max_length, sos_token=1):
    enc_out, enc_hidden = encoder_forward(params["encoder"], input_ids, input_lengths)
    dec = params["decoder"]
    n_dec = dec["w_ih"].shape[0]
    dec_h0 = enc_hidden[:n_dec, :1, :]        # decoder_hidden = encoder_hidden[:n_layers]
    # Greedy search decodes a single sequence (batch element 0), as the module implies.
    return greedy_decode(dec, enc_out[:, 0, :], dec_h0, max_length, sos_token)


# ============================================================================
# Deterministic parameter init (shapes follow nn.GRU / Luong attention decoder)
# ============================================================================
def init_params(key, vocab, hidden_size, n_enc_layers=2, n_dec_layers=2):
    H = hidden_size
    scale = 1.0 / math.sqrt(H)

    def uni(k, shape):
        return jax.random.uniform(k, shape, jnp.float32, -scale, scale)

    keys = iter(jax.random.split(key, 64))
    embedding = uni(next(keys), (vocab, H))   # shared embedding (as in the tutorial)

    enc_layers = []
    for l in range(n_enc_layers):
        I = H if l == 0 else 2 * H
        enc_layers.append({
            "w_ih": uni(next(keys), (2, I, 3 * H)),   # [dir]; fused gate cols (r, z, n)
            "w_hh": uni(next(keys), (2, H, 3 * H)),
            "b_ih": uni(next(keys), (2, 1, 3 * H)),
            "b_hh": uni(next(keys), (2, 1, 3 * H)),
        })

    decoder = {
        "embedding": embedding,
        "w_ih": uni(next(keys), (n_dec_layers, H, 3 * H)),
        "w_hh": uni(next(keys), (n_dec_layers, H, 3 * H)),
        "b_ih": uni(next(keys), (n_dec_layers, 1, 3 * H)),
        "b_hh": uni(next(keys), (n_dec_layers, 1, 3 * H)),
        "w_cat": uni(next(keys), (2 * H, H)),
        "b_cat": uni(next(keys), (1, H)),
        "w_out": uni(next(keys), (H, vocab)),
        "b_out": uni(next(keys), (1, vocab)),
    }
    return {"encoder": {"embedding": embedding, "layers": enc_layers},
            "decoder": decoder}


if __name__ == "__main__":
    T, B, H, V = 8, 1, 32, 50
    max_length = 6

    key = jax.random.PRNGKey(0)
    k_param, k_ids, k_ids2 = jax.random.split(key, 3)
    params = init_params(k_param, V, H)

    # --- sanity check of the encoder kernel alone (batch 2 with padding) ---
    ids2 = jax.random.randint(k_ids2, (T, 2), 0, V, dtype=jnp.int32)
    lens2 = jnp.array([T, 5], dtype=jnp.int32)
    enc_o, enc_h = encoder_forward(params["encoder"], ids2, lens2)
    jax.block_until_ready((enc_o, enc_h))
    assert enc_o.shape == (T, 2, H), enc_o.shape
    assert enc_h.shape == (4, 2, H), enc_h.shape
    assert float(jnp.abs(enc_o[5:, 1, :]).max()) == 0.0   # padded steps exactly zero

    # --- full Seq2Seq greedy decode (batch 1, as in Seq2Seq.forward) ---
    input_ids = jax.random.randint(k_ids, (T, B), 0, V, dtype=jnp.int32)   # (seq, batch)
    input_lengths = jnp.array([T], dtype=jnp.int32)
    tokens, scores = seq2seq_forward(params, input_ids, input_lengths,
                                     max_length=max_length)
    jax.block_until_ready((tokens, scores))

    assert tokens.shape == (max_length,) and tokens.dtype == jnp.int32, (tokens.shape, tokens.dtype)
    assert scores.shape == (max_length,) and scores.dtype == jnp.float32, (scores.shape, scores.dtype)
    assert bool(jnp.all((tokens >= 0) & (tokens < V)))
    assert bool(jnp.all((scores > 0.0) & (scores <= 1.0)))

    print("KERNEL_OK")
</pallas_src>

<mosaic_0001>
module attributes {stable_mosaic.version = 11 : i64} {
  func.func @_bigru_layer_kernel(%arg0: i32, %arg1: memref<1x8x2x96xf32, #tpu.memory_space<vmem>>, %arg2: memref<8x2x1xf32, #tpu.memory_space<vmem>>, %arg3: memref<1x32x96xf32, #tpu.memory_space<vmem>>, %arg4: memref<1x1x96xf32, #tpu.memory_space<vmem>>, %arg5: memref<1x2x32xf32, #tpu.memory_space<vmem>>, %arg6: memref<1x8x2x32xf32, #tpu.memory_space<vmem>>, %arg7: memref<1x2x32xf32, #tpu.memory_space<vmem>>) attributes {dimension_semantics = [#tpu.dimension_semantics<parallel>], iteration_bounds = array<i64: 2>, scalar_prefetch = 0 : i64, scratch_operands = 0 : i64, tpu.core_type = #tpu.core_type<tc>, window_params = [{transform_indices = @transform_0, window_bounds = array<i64: 1, 8, 2, 96>}, {pipeline_mode = #tpu.pipeline_mode<synchronous>, transform_indices = @transform_1, window_bounds = array<i64: 8, 2, 1>}, {transform_indices = @transform_2, window_bounds = array<i64: 1, 32, 96>}, {transform_indices = @transform_3, window_bounds = array<i64: 1, 1, 96>}, {transform_indices = @transform_4, window_bounds = array<i64: 1, 2, 32>}, {transform_indices = @transform_5, window_bounds = array<i64: 1, 8, 2, 32>}, {transform_indices = @transform_6, window_bounds = array<i64: 1, 2, 32>}]} {
    %c0 = arith.constant 0 : index
    %c0_0 = arith.constant 0 : index
    %c0_1 = arith.constant 0 : index
    %0 = vector.load %arg3[%c0, %c0_0, %c0_1] : memref<1x32x96xf32, #tpu.memory_space<vmem>>, vector<1x32x96xf32>
    %1 = vector.shape_cast %0 : vector<1x32x96xf32> to vector<32x96xf32>
    %c0_2 = arith.constant 0 : index
    %c0_3 = arith.constant 0 : index
    %c0_4 = arith.constant 0 : index
    %2 = vector.load %arg4[%c0_2, %c0_3, %c0_4] : memref<1x1x96xf32, #tpu.memory_space<vmem>>, vector<1x1x96xf32>
    %3 = vector.shape_cast %2 : vector<1x1x96xf32> to vector<1x96xf32>
    %c0_5 = arith.constant 0 : index
    %c0_6 = arith.constant 0 : index
    %c0_7 = arith.constant 0 : index
    %4 = vector.load %arg5[%c0_5, %c0_6, %c0_7] : memref<1x2x32xf32, #tpu.memory_space<vmem>>, vector<1x2x32xf32>
    %5 = vector.shape_cast %4 : vector<1x2x32xf32> to vector<2x32xf32>
    %c0_i32 = arith.constant 0 : i32
    %c0_i32_8 = arith.constant 0 : i32
    %6 = arith.cmpi eq, %arg0, %c0_i32_8 : i32
    %c7_i32 = arith.constant 7 : i32
    %7 = arith.subi %c7_i32, %c0_i32 : i32
    %8 = arith.select %6, %c0_i32, %7 : i32
    %c0_9 = arith.constant 0 : index
    %9 = arith.index_cast %8 : i32 to index
    %c0_10 = arith.constant 0 : index
    %c0_11 = arith.constant 0 : index
    %10 = vector.load %arg1[%c0_9, %9, %c0_10, %c0_11] : memref<1x8x2x96xf32, #tpu.memory_space<vmem>>, vector<1x1x2x96xf32>
    %11 = vector.shape_cast %10 : vector<1x1x2x96xf32> to vector<2x96xf32>
    %12 = arith.index_cast %8 : i32 to index
    %c0_12 = arith.constant 0 : index
    %c0_13 = arith.constant 0 : index
    %13 = vector.load %arg2[%12, %c0_12, %c0_13] : memref<8x2x1xf32, #tpu.memory_space<vmem>>, vector<1x2x1xf32>
    %14 = vector.shape_cast %13 : vector<1x2x1xf32> to vector<2x1xf32>
    %cst = arith.constant dense<0.000000e+00> : vector<2x96xf32>
    %15 = tpu.matmul %5, %1, %cst {dimension_numbers = #tpu.dot_dimension_numbers<[1], [0], [0], [1], [0, 0, 1, 1], [], []>} : vector<2x32xf32>, vector<32x96xf32>, vector<2x96xf32> -> vector<2x96xf32>
    %16 = vector.broadcast %3 : vector<1x96xf32> to vector<2x96xf32>
    %17 = arith.addf %15, %16 : vector<2x96xf32>
    %18 = vector.extract_strided_slice %11 {offsets = [0, 0], sizes = [2, 32], strides = [1, 1]} : vector<2x96xf32> to vector<2x32xf32>
    %19 = vector.extract_strided_slice %17 {offsets = [0, 0], sizes = [2, 32], strides = [1, 1]} : vector<2x96xf32> to vector<2x32xf32>
    %20 = arith.addf %18, %19 : vector<2x32xf32>
    %21 = arith.negf %20 : vector<2x32xf32>
    %22 = math.exp %21 : vector<2x32xf32>
    %cst_14 = arith.constant 1.000000e+00 : f32
    %23 = vector.broadcast %cst_14 : f32 to vector<2x32xf32>
    %24 = arith.addf %23, %22 : vector<2x32xf32>
    %25 = arith.divf %23, %24 : vector<2x32xf32>
    %26 = vector.extract_strided_slice %11 {offsets = [0, 32], sizes = [2, 32], strides = [1, 1]} : vector<2x96xf32> to vector<2x32xf32>
    %27 = vector.extract_strided_slice %17 {offsets = [0, 32], sizes = [2, 32], strides = [1, 1]} : vector<2x96xf32> to vector<2x32xf32>
    %28 = arith.addf %26, %27 : vector<2x32xf32>
    %29 = arith.negf %28 : vector<2x32xf32>
    %30 = math.exp %29 : vector<2x32xf32>
    %cst_15 = arith.constant 1.000000e+00 : f32
    %31 = vector.broadcast %cst_15 : f32 to vector<2x32xf32>
    %32 = arith.addf %31, %30 : vector<2x32xf32>
    %33 = arith.divf %31, %32 : vector<2x32xf32>
    %34 = vector.extract_strided_slice %11 {offsets = [0, 64], sizes = [2, 32], strides = [1, 1]} : vector<2x96xf32> to vector<2x32xf32>
    %35 = vector.extract_strided_slice %17 {offsets = [0, 64], sizes = [2, 32], strides = [1, 1]} : vector<2x96xf32> to vector<2x32xf32>
    %36 = arith.mulf %25, %35 : vector<2x32xf32>
    %37 = arith.addf %34, %36 : vector<2x32xf32>
    %38 = math.tanh %37 : vector<2x32xf32>
    %cst_16 = arith.constant 1.000000e+00 : f32
    %39 = vector.broadcast %cst_16 : f32 to vector<2x32xf32>
    %40 = arith.subf %39, %33 : vector<2x32xf32>
    %41 = arith.mulf %40, %38 : vector<2x32xf32>
    %42 = arith.mulf %33, %5 : vector<2x32xf32>
    %43 = arith.addf %41, %42 : vector<2x32xf32>
    %44 = vector.broadcast %14 : vector<2x1xf32> to vector<2x32xf32>
    %45 = arith.mulf %44, %43 : vector<2x32xf32>
    %c0_17 = arith.constant 0 : index
    %46 = arith.index_cast %8 : i32 to index
    %c0_18 = arith.constant 0 : index
    %c0_19 = arith.constant 0 : index
    %47 = vector.load %arg6[%c0_17, %46, %c0_18, %c0_19] : memref<1x8x2x32xf32, #tpu.memory_space<vmem>>, vector<1x1x2x32xf32>
    %48 = vector.shape_cast %47 : vector<1x1x2x32xf32> to vector<2x32xf32>
    %49 = vector.shape_cast %45 : vector<2x32xf32> to vector<1x1x2x32xf32>
    tpu.vector_store %arg6[%c0_17, %46, %c0_18, %c0_19], %49 {strides = array<i32>} : memref<1x8x2x32xf32, #tpu.memory_space<vmem>>, vector<1x1x2x32xf32>,
    %cst_20 = arith.constant 1.000000e+00 : f32
    %50 = vector.broadcast %cst_20 : f32 to vector<2x1xf32>
    %51 = arith.subf %50, %14 : vector<2x1xf32>
    %52 = vector.broadcast %51 : vector<2x1xf32> to vector<2x32xf32>
    %53 = arith.mulf %52, %5 : vector<2x32xf32>
    %54 = arith.addf %45, %53 : vector<2x32xf32>
    %c1_i32 = arith.constant 1 : i32
    %c0_i32_21 = arith.constant 0 : i32
    %55 = arith.cmpi eq, %arg0, %c0_i32_21 : i32
    %c7_i32_22 = arith.constant 7 : i32
    %56 = arith.subi %c7_i32_22, %c1_i32 : i32
    %57 = arith.select %55, %c1_i32, %56 : i32
    %c0_23 = arith.constant 0 : index
    %58 = arith.index_cast %57 : i32 to index
    %c0_24 = arith.constant 0 : index
    %c0_25 = arith.constant 0 : index
    %59 = vector.load %arg1[%c0_23, %58, %c0_24, %c0_25] : memref<1x8x2x96xf32, #tpu.memory_space<vmem>>, vector<1x1x2x96xf32>
    %60 = vector.shape_cast %59 : vector<1x1x2x96xf32> to vector<2x96xf32>
    %61 = arith.index_cast %57 : i32 to index
    %c0_26 = arith.constant 0 : index
    %c0_27 = arith.constant 0 : index
    %62 = vector.load %arg2[%61, %c0_26, %c0_27] : memref<8x2x1xf32, #tpu.memory_space<vmem>>, vector<1x2x1xf32>
    %63 = vector.shape_cast %62 : vector<1x2x1xf32> to vector<2x1xf32>
    %cst_28 = arith.constant dense<0.000000e+00> : vector<2x96xf32>
    %64 = tpu.matmul %54, %1, %cst_28 {dimension_numbers = #tpu.dot_dimension_numbers<[1], [0], [0], [1], [0, 0, 1, 1], [], []>} : vector<2x32xf32>, vector<32x96xf32>, vector<2x96xf32> -> vector<2x96xf32>
    %65 = vector.broadcast %3 : vector<1x96xf32> to vector<2x96xf32>
    %66 = arith.addf %64, %65 : vector<2x96xf32>
    %67 = vector.extract_strided_slice %60 {offsets = [0, 0], sizes = [2, 32], strides = [1, 1]} : vector<2x96xf32> to vector<2x32xf32>
    %68 = vector.extract_strided_slice %66 {offsets = [0, 0], sizes = [2, 32], strides = [1, 1]} : vector<2x96xf32> to vector<2x32xf32>
    %69 = arith.addf %67, %68 : vector<2x32xf32>
    %70 = arith.negf %69 : vector<2x32xf32>
    %71 = math.exp %70 : vector<2x32xf32>
    %cst_29 = arith.constant 1.000000e+00 : f32
    %72 = vector.broadcast %cst_29 : f32 to vector<2x32xf32>
    %73 = arith.addf %72, %71 : vector<2x32xf32>
    %74 = arith.divf %72, %73 : vector<2x32xf32>
    %75 = vector.extract_strided_slice %60 {offsets = [0, 32], sizes = [2, 32], strides = [1, 1]} : vector<2x96xf32> to vector<2x32xf32>
    %76 = vector.extract_strided_slice %66 {offsets = [0, 32], sizes = [2, 32], strides = [1, 1]} : vector<2x96xf32> to vector<2x32xf32>
    %77 = arith.addf %75, %76 : vector<2x32xf32>
    %78 = arith.negf %77 : vector<2x32xf32>
    %79 = math.exp %78 : vector<2x32xf32>
    %cst_30 = arith.constant 1.000000e+00 : f32
    %80 = vector.broadcast %cst_30 : f32 to vector<2x32xf32>
    %81 = arith.addf %80, %79 : vector<2x32xf32>
    %82 = arith.divf %80, %81 : vector<2x32xf32>
    %83 = vector.extract_strided_slice %60 {offsets = [0, 64], sizes = [2, 32], strides = [1, 1]} : vector<2x96xf32> to vector<2x32xf32>
    %84 = vector.extract_strided_slice %66 {offsets = [0, 64], sizes = [2, 32], strides = [1, 1]} : vector<2x96xf32> to vector<2x32xf32>
    %85 = arith.mulf %74, %84 : vector<2x32xf32>
    %86 = arith.addf %83, %85 : vector<2x32xf32>
    %87 = math.tanh %86 : vector<2x32xf32>
    %cst_31 = arith.constant 1.000000e+00 : f32
    %88 = vector.broadcast %cst_31 : f32 to vector<2x32xf32>
    %89 = arith.subf %88, %82 : vector<2x32xf32>
    %90 = arith.mulf %89, %87 : vector<2x32xf32>
    %91 = arith.mulf %82, %54 : vector<2x32xf32>
    %92 = arith.addf %90, %91 : vector<2x32xf32>
    %93 = vector.broadcast %63 : vector<2x1xf32> to vector<2x32xf32>
    %94 = arith.mulf %93, %92 : vector<2x32xf32>
    %c0_32 = arith.constant 0 : index
    %95 = arith.index_cast %57 : i32 to index
    %c0_33 = arith.constant 0 : index
    %c0_34 = arith.constant 0 : index
    %96 = vector.load %arg6[%c0_32, %95, %c0_33, %c0_34] : memref<1x8x2x32xf32, #tpu.memory_space<vmem>>, vector<1x1x2x32xf32>
    %97 = vector.shape_cast %96 : vector<1x1x2x32xf32> to vector<2x32xf32>
    %98 = vector.shape_cast %94 : vector<2x32xf32> to vector<1x1x2x32xf32>
    tpu.vector_store %arg6[%c0_32, %95, %c0_33, %c0_34], %98 {strides = array<i32>} : memref<1x8x2x32xf32, #tpu.memory_space<vmem>>, vector<1x1x2x32xf32>,
    %cst_35 = arith.constant 1.000000e+00 : f32
    %99 = vector.broadcast %cst_35 : f32 to vector<2x1xf32>
    %100 = arith.subf %99, %63 : vector<2x1xf32>
    %101 = vector.broadcast %100 : vector<2x1xf32> to vector<2x32xf32>
    %102 = arith.mulf %101, %54 : vector<2x32xf32>
    %103 = arith.addf %94, %102 : vector<2x32xf32>
    %c2_i32 = arith.constant 2 : i32
    %c0_i32_36 = arith.constant 0 : i32
    %104 = arith.cmpi eq, %arg0, %c0_i32_36 : i32
    %c7_i32_37 = arith.constant 7 : i32
    %105 = arith.subi %c7_i32_37, %c2_i32 : i32
    %106 = arith.select %104, %c2_i32, %105 : i32
    %c0_38 = arith.constant 0 : index
    %107 = arith.index_cast %106 : i32 to index
    %c0_39 = arith.constant 0 : index
    %c0_40 = arith.constant 0 : index
    %108 = vector.load %arg1[%c0_38, %107, %c0_39, %c0_40] : memref<1x8x2x96xf32, #tpu.memory_space<vmem>>, vector<1x1x2x96xf32>
    %109 = vector.shape_cast %108 : vector<1x1x2x96xf32> to vector<2x96xf32>
    %110 = arith.index_cast %106 : i32 to index
    %c0_41 = arith.constant 0 : index
    %c0_42 = arith.constant 0 : index
    %111 = vector.load %arg2[%110, %c0_41, %c0_42] : memref<8x2x1xf32, #tpu.memory_space<vmem>>, vector<1x2x1xf32>
    %112 = vector.shape_cast %111 : vector<1x2x1xf32> to vector<2x1xf32>
    %cst_43 = arith.constant dense<0.000000e+00> : vector<2x96xf32>
    %113 = tpu.matmul %103, %1, %cst_43 {dimension_numbers = #tpu.dot_dimension_numbers<[1], [0], [0], [1], [0, 0, 1, 1], [], []>} : vector<2x32xf32>, vector<32x96xf32>, vector<2x96xf32> -> vector<2x96xf32>
    %114 = vector.broadcast %3 : vector<1x96xf32> to vector<2x96xf32>
    %115 = arith.addf %113, %114 : vector<2x96xf32>
    %116 = vector.extract_strided_slice %109 {offsets = [0, 0], sizes = [2, 32], strides = [1, 1]} : vector<2x96xf32> to vector<2x32xf32>
    %117 = vector.extract_strided_slice %115 {offsets = [0, 0], sizes = [2, 32], strides = [1, 1]} : vector<2x96xf32> to vector<2x32xf32>
    %118 = arith.addf %116, %117 : vector<2x32xf32>
    %119 = arith.negf %118 : vector<2x32xf32>
    %120 = math.exp %119 : vector<2x32xf32>
    %cst_44 = arith.constant 1.000000e+00 : f32
    %121 = vector.broadcast %cst_44 : f32 to vector<2x32xf32>
    %122 = arith.addf %121, %120 : vector<2x32xf32>
    %123 = arith.divf %121, %122 : vector<2x32xf32>
    %124 = vector.extract_strided_slice %109 {offsets = [0, 32], sizes = [2, 32], strides = [1, 1]} : vector<2x96xf32> to vector<2x32xf32>
    %125 = vector.extract_strided_slice %115 {offsets = [0, 32], sizes = [2, 32], strides = [1, 1]} : vector<2x96xf32> to vector<2x32xf32>
    %126 = arith.addf %124, %125 : vector<2x32xf32>
    %127 = arith.negf %126 : vector<2x32xf32>
    %128 = math.exp %127 : vector<2x32xf32>
    %cst_45 = arith.constant 1.000000e+00 : f32
    %129 = vector.broadcast %cst_45 : f32 to vector<2x32xf32>
    %130 = arith.addf %129, %128 : vector<2x32xf32>
    %131 = arith.divf %129, %130 : vector<2x32xf32>
    %132 = vector.extract_strided_slice %109 {offsets = [0, 64], sizes = [2, 32], strides = [1, 1]} : vector<2x96xf32> to vector<2x32xf32>
    %133 = vector.extract_strided_slice %115 {offsets = [0, 64], sizes = [2, 32], strides = [1, 1]} : vector<2x96xf32> to vector<2x32xf32>
    %134 = arith.mulf %123, %133 : vector<2x32xf32>
    %135 = arith.addf %132, %134 : vector<2x32xf32>
    %136 = math.tanh %135 : vector<2x32xf32>
    %cst_46 = arith.constant 1.000000e+00 : f32
    %137 = vector.broadcast %cst_46 : f32 to vector<2x32xf32>
    %138 = arith.subf %137, %131 : vector<2x32xf32>
    %139 = arith.mulf %138, %136 : vector<2x32xf32>
    %140 = arith.mulf %131, %103 : vector<2x32xf32>
    %141 = arith.addf %139, %140 : vector<2x32xf32>
    %142 = vector.broadcast %112 : vector<2x1xf32> to vector<2x32xf32>
    %143 = arith.mulf %142, %141 : vector<2x32xf32>
    %c0_47 = arith.constant 0 : index
    %144 = arith.index_cast %106 : i32 to index
    %c0_48 = arith.constant 0 : index
    %c0_49 = arith.constant 0 : index
    %145 = vector.load %arg6[%c0_47, %144, %c0_48, %c0_49] : memref<1x8x2x32xf32, #tpu.memory_space<vmem>>, vector<1x1x2x32xf32>
    %146 = vector.shape_cast %145 : vector<1x1x2x32xf32> to vector<2x32xf32>
    %147 = vector.shape_cast %143 : vector<2x32xf32> to vector<1x1x2x32xf32>
    tpu.vector_store %arg6[%c0_47, %144, %c0_48, %c0_49], %147 {strides = array<i32>} : memref<1x8x2x32xf32, #tpu.memory_space<vmem>>, vector<1x1x2x32xf32>,
    %cst_50 = arith.constant 1.000000e+00 : f32
    %148 = vector.broadcast %cst_50 : f32 to vector<2x1xf32>
    %149 = arith.subf %148, %112 : vector<2x1xf32>
    %150 = vector.broadcast %149 : vector<2x1xf32> to vector<2x32xf32>
    %151 = arith.mulf %150, %103 : vector<2x32xf32>
    %152 = arith.addf %143, %151 : vector<2x32xf32>
    %c3_i32 = arith.constant 3 : i32
    %c0_i32_51 = arith.constant 0 : i32
    %153 = arith.cmpi eq, %arg0, %c0_i32_51 : i32
    %c7_i32_52 = arith.constant 7 : i32
    %154 = arith.subi %c7_i32_52, %c3_i32 : i32
    %155 = arith.select %153, %c3_i32, %154 : i32
    %c0_53 = arith.constant 0 : index
    %156 = arith.index_cast %155 : i32 to index
    %c0_54 = arith.constant 0 : index
    %c0_55 = arith.constant 0 : index
    %157 = vector.load %arg1[%c0_53, %156, %c0_54, %c0_55] : memref<1x8x2x96xf32, #tpu.memory_space<vmem>>, vector<1x1x2x96xf32>
    %158 = vector.shape_cast %157 : vector<1x1x2x96xf32> to vector<2x96xf32>
    %159 = arith.index_cast %155 : i32 to index
    %c0_56 = arith.constant 0 : index
    %c0_57 = arith.constant 0 : index
    %160 = vector.load %arg2[%159, %c0_56, %c0_57] : memref<8x2x1xf32, #tpu.memory_space<vmem>>, vector<1x2x1xf32>
    %161 = vector.shape_cast %160 : vector<1x2x1xf32> to vector<2x1xf32>
    %cst_58 = arith.constant dense<0.000000e+00> : vector<2x96xf32>
    %162 = tpu.matmul %152, %1, %cst_58 {dimension_numbers = #tpu.dot_dimension_numbers<[1], [0], [0], [1], [0, 0, 1, 1], [], []>} : vector<2x32xf32>, vector<32x96xf32>, vector<2x96xf32> -> vector<2x96xf32>
    %163 = vector.broadcast %3 : vector<1x96xf32> to vector<2x96xf32>
    %164 = arith.addf %162, %163 : vector<2x96xf32>
    %165 = vector.extract_strided_slice %158 {offsets = [0, 0], sizes = [2, 32], strides = [1, 1]} : vector<2x96xf32> to vector<2x32xf32>
    %166 = vector.extract_strided_slice %164 {offsets = [0, 0], sizes = [2, 32], strides = [1, 1]} : vector<2x96xf32> to vector<2x32xf32>
    %167 = arith.addf %165, %166 : vector<2x32xf32>
    %168 = arith.negf %167 : vector<2x32xf32>
    %169 = math.exp %168 : vector<2x32xf32>
    %cst_59 = arith.constant 1.000000e+00 : f32
    %170 = vector.broadcast %cst_59 : f32 to vector<2x32xf32>
    %171 = arith.addf %170, %169 : vector<2x32xf32>
    %172 = arith.divf %170, %171 : vector<2x32xf32>
    %173 = vector.extract_strided_slice %158 {offsets = [0, 32], sizes = [2, 32], strides = [1, 1]} : vector<2x96xf32> to vector<2x32xf32>
    %174 = vector.extract_strided_slice %164 {offsets = [0, 32], sizes = [2, 32], strides = [1, 1]} : vector<2x96xf32> to vector<2x32xf32>
    %175 = arith.addf %173, %174 : vector<2x32xf32>
    %176 = arith.negf %175 : vector<2x32xf32>
    %177 = math.exp %176 : vector<2x32xf32>
    %cst_60 = arith.constant 1.000000e+00 : f32
    %178 = vector.broadcast %cst_60 : f32 to vector<2x32xf32>
    %179 = arith.addf %178, %177 : vector<2x32xf32>
    %180 = arith.divf %178, %179 : vector<2x32xf32>
    %181 = vector.extract_strided_slice %158 {offsets = [0, 64], sizes = [2, 32], strides = [1, 1]} : vector<2x96xf32> to vector<2x32xf32>
    %182 = vector.extract_strided_slice %164 {offsets = [0, 64], sizes = [2, 32], strides = [1, 1]} : vector<2x96xf32> to vector<2x32xf32>
    %183 = arith.mulf %172, %182 : vector<2x32xf32>
    %184 = arith.addf %181, %183 : vector<2x32xf32>
    %185 = math.tanh %184 : vector<2x32xf32>
    %cst_61 = arith.constant 1.000000e+00 : f32
    %186 = vector.broadcast %cst_61 : f32 to vector<2x32xf32>
    %187 = arith.subf %186, %180 : vector<2x32xf32>
    %188 = arith.mulf %187, %185 : vector<2x32xf32>
    %189 = arith.mulf %180, %152 : vector<2x32xf32>
    %190 = arith.addf %188, %189 : vector<2x32xf32>
    %191 = vector.broadcast %161 : vector<2x1xf32> to vector<2x32xf32>
    %192 = arith.mulf %191, %190 : vector<2x32xf32>
    %c0_62 = arith.constant 0 : index
    %193 = arith.index_cast %155 : i32 to index
    %c0_63 = arith.constant 0 : index
    %c0_64 = arith.constant 0 : index
    %194 = vector.load %arg6[%c0_62, %193, %c0_63, %c0_64] : memref<1x8x2x32xf32, #tpu.memory_space<vmem>>, vector<1x1x2x32xf32>
    %195 = vector.shape_cast %194 : vector<1x1x2x32xf32> to vector<2x32xf32>
    %196 = vector.shape_cast %192 : vector<2x32xf32> to vector<1x1x2x32xf32>
    tpu.vector_store %arg6[%c0_62, %193, %c0_63, %c0_64], %196 {strides = array<i32>} : memref<1x8x2x32xf32, #tpu.memory_space<vmem>>, vector<1x1x2x32xf32>,
    %cst_65 = arith.constant 1.000000e+00 : f32
    %197 = vector.broadcast %cst_65 : f32 to vector<2x1xf32>
    %198 = arith.subf %197, %161 : vector<2x1xf32>
    %199 = vector.broadcast %198 : vector<2x1xf32> to vector<2x32xf32>
    %200 = arith.mulf %199, %152 : vector<2x32xf32>
    %201 = arith.addf %192, %200 : vector<2x32xf32>
    %c4_i32 = arith.constant 4 : i32
    %c0_i32_66 = arith.constant 0 : i32
    %202 = arith.cmpi eq, %arg0, %c0_i32_66 : i32
    %c7_i32_67 = arith.constant 7 : i32
    %203 = arith.subi %c7_i32_67, %c4_i32 : i32
    %204 = arith.select %202, %c4_i32, %203 : i32
    %c0_68 = arith.constant 0 : index
    %205 = arith.index_cast %204 : i32 to index
    %c0_69 = arith.constant 0 : index
    %c0_70 = arith.constant 0 : index
    %206 = vector.load %arg1[%c0_68, %205, %c0_69, %c0_70] : memref<1x8x2x96xf32, #tpu.memory_space<vmem>>, vector<1x1x2x96xf32>
    %207 = vector.shape_cast %206 : vector<1x1x2x96xf32> to vector<2x96xf32>
    %208 = arith.index_cast %204 : i32 to index
    %c0_71 = arith.constant 0 : index
    %c0_72 = arith.constant 0 : index
    %209 = vector.load %arg2[%208, %c0_71, %c0_72] : memref<8x2x1xf32, #tpu.memory_space<vmem>>, vector<1x2x1xf32>
    %210 = vector.shape_cast %209 : vector<1x2x1xf32> to vector<2x1xf32>
    %cst_73 = arith.constant dense<0.000000e+00> : vector<2x96xf32>
    %211 = tpu.matmul %201, %1, %cst_73 {dimension_numbers = #tpu.dot_dimension_numbers<[1], [0], [0], [1], [0, 0, 1, 1], [], []>} : vector<2x32xf32>, vector<32x96xf32>, vector<2x96xf32> -> vector<2x96xf32>
    %212 = vector.broadcast %3 : vector<1x96xf32> to vector<2x96xf32>
    %213 = arith.addf %211, %212 : vector<2x96xf32>
    %214 = vector.extract_strided_slice %207 {offsets = [0, 0], sizes = [2, 32], strides = [1, 1]} : vector<2x96xf32> to vector<2x32xf32>
    %215 = vector.extract_strided_slice %213 {offsets = [0, 0], sizes = [2, 32], strides = [1, 1]} : vector<2x96xf32> to vector<2x32xf32>
    %216 = arith.addf %214, %215 : vector<2x32xf32>
    %217 = arith.negf %216 : vector<2x32xf32>
    %218 = math.exp %217 : vector<2x32xf32>
    %cst_74 = arith.constant 1.000000e+00 : f32
    %219 = vector.broadcast %cst_74 : f32 to vector<2x32xf32>
    %220 = arith.addf %219, %218 : vector<2x32xf32>
    %221 = arith.divf %219, %220 : vector<2x32xf32>
    %222 = vector.extract_strided_slice %207 {offsets = [0, 32], sizes = [2, 32], strides = [1, 1]} : vector<2x96xf32> to vector<2x32xf32>
    %223 = vector.extract_strided_slice %213 {offsets = [0, 32], sizes = [2, 32], strides = [1, 1]} : vector<2x96xf32> to vector<2x32xf32>
    %224 = arith.addf %222, %223 : vector<2x32xf32>
    %225 = arith.negf %224 : vector<2x32xf32>
    %226 = math.exp %225 : vector<2x32xf32>
    %cst_75 = arith.constant 1.000000e+00 : f32
    %227 = vector.broadcast %cst_75 : f32 to vector<2x32xf32>
    %228 = arith.addf %227, %226 : vector<2x32xf32>
    %229 = arith.divf %227, %228 : vector<2x32xf32>
    %230 = vector.extract_strided_slice %207 {offsets = [0, 64], sizes = [2, 32], strides = [1, 1]} : vector<2x96xf32> to vector<2x32xf32>
    %231 = vector.extract_strided_slice %213 {offsets = [0, 64], sizes = [2, 32], strides = [1, 1]} : vector<2x96xf32> to vector<2x32xf32>
    %232 = arith.mulf %221, %231 : vector<2x32xf32>
    %233 = arith.addf %230, %232 : vector<2x32xf32>
    %234 = math.tanh %233 : vector<2x32xf32>
    %cst_76 = arith.constant 1.000000e+00 : f32
    %235 = vector.broadcast %cst_76 : f32 to vector<2x32xf32>
    %236 = arith.subf %235, %229 : vector<2x32xf32>
    %237 = arith.mulf %236, %234 : vector<2x32xf32>
    %238 = arith.mulf %229, %201 : vector<2x32xf32>
    %239 = arith.addf %237, %238 : vector<2x32xf32>
    %240 = vector.broadcast %210 : vector<2x1xf32> to vector<2x32xf32>
    %241 = arith.mulf %240, %239 : vector<2x32xf32>
    %c0_77 = arith.constant 0 : index
    %242 = arith.index_cast %204 : i32 to index
    %c0_78 = arith.constant 0 : index
    %c0_79 = arith.constant 0 : index
    %243 = vector.load %arg6[%c0_77, %242, %c0_78, %c0_79] : memref<1x8x2x32xf32, #tpu.memory_space<vmem>>, vector<1x1x2x32xf32>
    %244 = vector.shape_cast %243 : vector<1x1x2x32xf32> to vector<2x32xf32>
    %245 = vector.shape_cast %241 : vector<2x32xf32> to vector<1x1x2x32xf32>
    tpu.vector_store %arg6[%c0_77, %242, %c0_78, %c0_79], %245 {strides = array<i32>} : memref<1x8x2x32xf32, #tpu.memory_space<vmem>>, vector<1x1x2x32xf32>,
    %cst_80 = arith.constant 1.000000e+00 : f32
    %246 = vector.broadcast %cst_80 : f32 to vector<2x1xf32>
    %247 = arith.subf %246, %210 : vector<2x1xf32>
    %248 = vector.broadcast %247 : vector<2x1xf32> to vector<2x32xf32>
    %249 = arith.mulf %248, %201 : vector<2x32xf32>
    %250 = arith.addf %241, %249 : vector<2x32xf32>
    %c5_i32 = arith.constant 5 : i32
    %c0_i32_81 = arith.constant 0 : i32
    %251 = arith.cmpi eq, %arg0, %c0_i32_81 : i32
    %c7_i32_82 = arith.constant 7 : i32
    %252 = arith.subi %c7_i32_82, %c5_i32 : i32
    %253 = arith.select %251, %c5_i32, %252 : i32
    %c0_83 = arith.constant 0 : index
    %254 = arith.index_cast %253 : i32 to index
    %c0_84 = arith.constant 0 : index
    %c0_85 = arith.constant 0 : index
    %255 = vector.load %arg1[%c0_83, %254, %c0_84, %c0_85] : memref<1x8x2x96xf32, #tpu.memory_space<vmem>>, vector<1x1x2x96xf32>
    %256 = vector.shape_cast %255 : vector<1x1x2x96xf32> to vector<2x96xf32>
    %257 = arith.index_cast %253 : i32 to index
    %c0_86 = arith.constant 0 : index
    %c0_87 = arith.constant 0 : index
    %258 = vector.load %arg2[%257, %c0_86, %c0_87] : memref<8x2x1xf32, #tpu.memory_space<vmem>>, vector<1x2x1xf32>
    %259 = vector.shape_cast %258 : vector<1x2x1xf32> to vector<2x1xf32>
    %cst_88 = arith.constant dense<0.000000e+00> : vector<2x96xf32>
    %260 = tpu.matmul %250, %1, %cst_88 {dimension_numbers = #tpu.dot_dimension_numbers<[1], [0], [0], [1], [0, 0, 1, 1], [], []>} : vector<2x32xf32>, vector<32x96xf32>, vector<2x96xf32> -> vector<2x96xf32>
    %261 = vector.broadcast %3 : vector<1x96xf32> to vector<2x96xf32>
    %262 = arith.addf %260, %261 : vector<2x96xf32>
    %263 = vector.extract_strided_slice %256 {offsets = [0, 0], sizes = [2, 32], strides = [1, 1]} : vector<2x96xf32> to vector<2x32xf32>
    %264 = vector.extract_strided_slice %262 {offsets = [0, 0], sizes = [2, 32], strides = [1, 1]} : vector<2x96xf32> to vector<2x32xf32>
    %265 = arith.addf %263, %264 : vector<2x32xf32>
    %266 = arith.negf %265 : vector<2x32xf32>
    %267 = math.exp %266 : vector<2x32xf32>
    %cst_89 = arith.constant 1.000000e+00 : f32
    %268 = vector.broadcast %cst_89 : f32 to vector<2x32xf32>
    %269 = arith.addf %268, %267 : vector<2x32xf32>
    %270 = arith.divf %268, %269 : vector<2x32xf32>
    %271 = vector.extract_strided_slice %256 {offsets = [0, 32], sizes = [2, 32], strides = [1, 1]} : vector<2x96xf32> to vector<2x32xf32>
    %272 = vector.extract_strided_slice %262 {offsets = [0, 32], sizes = [2, 32], strides = [1, 1]} : vector<2x96xf32> to vector<2x32xf32>
    %273 = arith.addf %271, %272 : vector<2x32xf32>
    %274 = arith.negf %273 : vector<2x32xf32>
    %275 = math.exp %274 : vector<2x32xf32>
    %cst_90 = arith.constant 1.000000e+00 : f32
    %276 = vector.broadcast %cst_90 : f32 to vector<2x32xf32>
    %277 = arith.addf %276, %275 : vector<2x32xf32>
    %278 = arith.divf %276, %277 : vector<2x32xf32>
    %279 = vector.extract_strided_slice %256 {offsets = [0, 64], sizes = [2, 32], strides = [1, 1]} : vector<2x96xf32> to vector<2x32xf32>
    %280 = vector.extract_strided_slice %262 {offsets = [0, 64], sizes = [2, 32], strides = [1, 1]} : vector<2x96xf32> to vector<2x32xf32>
    %281 = arith.mulf %270, %280 : vector<2x32xf32>
    %282 = arith.addf %279, %281 : vector<2x32xf32>
    %283 = math.tanh %282 : vector<2x32xf32>
    %cst_91 = arith.constant 1.000000e+00 : f32
    %284 = vector.broadcast %cst_91 : f32 to vector<2x32xf32>
    %285 = arith.subf %284, %278 : vector<2x32xf32>
    %286 = arith.mulf %285, %283 : vector<2x32xf32>
    %287 = arith.mulf %278, %250 : vector<2x32xf32>
    %288 = arith.addf %286, %287 : vector<2x32xf32>
    %289 = vector.broadcast %259 : vector<2x1xf32> to vector<2x32xf32>
    %290 = arith.mulf %289, %288 : vector<2x32xf32>
    %c0_92 = arith.constant 0 : index
    %291 = arith.index_cast %253 : i32 to index
    %c0_93 = arith.constant 0 : index
    %c0_94 = arith.constant 0 : index
    %292 = vector.load %arg6[%c0_92, %291, %c0_93, %c0_94] : memref<1x8x2x32xf32, #tpu.memory_space<vmem>>, vector<1x1x2x32xf32>
    %293 = vector.shape_cast %292 : vector<1x1x2x32xf32> to vector<2x32xf32>
    %294 = vector.shape_cast %290 : vector<2x32xf32> to vector<1x1x2x32xf32>
    tpu.vector_store %arg6[%c0_92, %291, %c0_93, %c0_94], %294 {strides = array<i32>} : memref<1x8x2x32xf32, #tpu.memory_space<vmem>>, vector<1x1x2x32xf32>,
    %cst_95 = arith.constant 1.000000e+00 : f32
    %295 = vector.broadcast %cst_95 : f32 to vector<2x1xf32>
    %296 = arith.subf %295, %259 : vector<2x1xf32>
    %297 = vector.broadcast %296 : vector<2x1xf32> to vector<2x32xf32>
    %298 = arith.mulf %297, %250 : vector<2x32xf32>
    %299 = arith.addf %290, %298 : vector<2x32xf32>
    %c6_i32 = arith.constant 6 : i32
    %c0_i32_96 = arith.constant 0 : i32
    %300 = arith.cmpi eq, %arg0, %c0_i32_96 : i32
    %c7_i32_97 = arith.constant 7 : i32
    %301 = arith.subi %c7_i32_97, %c6_i32 : i32
    %302 = arith.select %300, %c6_i32, %301 : i32
    %c0_98 = arith.constant 0 : index
    %303 = arith.index_cast %302 : i32 to index
    %c0_99 = arith.constant 0 : index
    %c0_100 = arith.constant 0 : index
    %304 = vector.load %arg1[%c0_98, %303, %c0_99, %c0_100] : memref<1x8x2x96xf32, #tpu.memory_space<vmem>>, vector<1x1x2x96xf32>
    %305 = vector.shape_cast %304 : vector<1x1x2x96xf32> to vector<2x96xf32>
    %306 = arith.index_cast %302 : i32 to index
    %c0_101 = arith.constant 0 : index
    %c0_102 = arith.constant 0 : index
    %307 = vector.load %arg2[%306, %c0_101, %c0_102] : memref<8x2x1xf32, #tpu.memory_space<vmem>>, vector<1x2x1xf32>
    %308 = vector.shape_cast %307 : vector<1x2x1xf32> to vector<2x1xf32>
    %cst_103 = arith.constant dense<0.000000e+00> : vector<2x96xf32>
    %309 = tpu.matmul %299, %1, %cst_103 {dimension_numbers = #tpu.dot_dimension_numbers<[1], [0], [0], [1], [0, 0, 1, 1], [], []>} : vector<2x32xf32>, vector<32x96xf32>, vector<2x96xf32> -> vector<2x96xf32>
    %310 = vector.broadcast %3 : vector<1x96xf32> to vector<2x96xf32>
    %311 = arith.addf %309, %310 : vector<2x96xf32>
    %312 = vector.extract_strided_slice %305 {offsets = [0, 0], sizes = [2, 32], strides = [1, 1]} : vector<2x96xf32> to vector<2x32xf32>
    %313 = vector.extract_strided_slice %311 {offsets = [0, 0], sizes = [2, 32], strides = [1, 1]} : vector<2x96xf32> to vector<2x32xf32>
    %314 = arith.addf %312, %313 : vector<2x32xf32>
    %315 = arith.negf %314 : vector<2x32xf32>
    %316 = math.exp %315 : vector<2x32xf32>
    %cst_104 = arith.constant 1.000000e+00 : f32
    %317 = vector.broadcast %cst_104 : f32 to vector<2x32xf32>
    %318 = arith.addf %317, %316 : vector<2x32xf32>
    %319 = arith.divf %317, %318 : vector<2x32xf32>
    %320 = vector.extract_strided_slice %305 {offsets = [0, 32], sizes = [2, 32], strides = [1, 1]} : vector<2x96xf32> to vector<2x32xf32>
    %321 = vector.extract_strided_slice %311 {offsets = [0, 32], sizes = [2, 32], strides = [1, 1]} : vector<2x96xf32> to vector<2x32xf32>
    %322 = arith.addf %320, %321 : vector<2x32xf32>
    %323 = arith.negf %322 : vector<2x32xf32>
    %324 = math.exp %323 : vector<2x32xf32>
    %cst_105 = arith.constant 1.000000e+00 : f32
    %325 = vector.broadcast %cst_105 : f32 to vector<2x32xf32>
    %326 = arith.addf %325, %324 : vector<2x32xf32>
    %327 = arith.divf %325, %326 : vector<2x32xf32>
    %328 = vector.extract_strided_slice %305 {offsets = [0, 64], sizes = [2, 32], strides = [1, 1]} : vector<2x96xf32> to vector<2x32xf32>
    %329 = vector.extract_strided_slice %311 {offsets = [0, 64], sizes = [2, 32], strides = [1, 1]} : vector<2x96xf32> to vector<2x32xf32>
    %330 = arith.mulf %319, %329 : vector<2x32xf32>
    %331 = arith.addf %328, %330 : vector<2x32xf32>
    %332 = math.tanh %331 : vector<2x32xf32>
    %cst_106 = arith.constant 1.000000e+00 : f32
    %333 = vector.broadcast %cst_106 : f32 to vector<2x32xf32>
    %334 = arith.subf %333, %327 : vector<2x32xf32>
    %335 = arith.mulf %334, %332 : vector<2x32xf32>
    %336 = arith.mulf %327, %299 : vector<2x32xf32>
    %337 = arith.addf %335, %336 : vector<2x32xf32>
    %338 = vector.broadcast %308 : vector<2x1xf32> to vector<2x32xf32>
    %339 = arith.mulf %338, %337 : vector<2x32xf32>
    %c0_107 = arith.constant 0 : index
    %340 = arith.index_cast %302 : i32 to index
    %c0_108 = arith.constant 0 : index
    %c0_109 = arith.constant 0 : index
    %341 = vector.load %arg6[%c0_107, %340, %c0_108, %c0_109] : memref<1x8x2x32xf32, #tpu.memory_space<vmem>>, vector<1x1x2x32xf32>
    %342 = vector.shape_cast %341 : vector<1x1x2x32xf32> to vector<2x32xf32>
    %343 = vector.shape_cast %339 : vector<2x32xf32> to vector<1x1x2x32xf32>
    tpu.vector_store %arg6[%c0_107, %340, %c0_108, %c0_109], %343 {strides = array<i32>} : memref<1x8x2x32xf32, #tpu.memory_space<vmem>>, vector<1x1x2x32xf32>,
    %cst_110 = arith.constant 1.000000e+00 : f32
    %344 = vector.broadcast %cst_110 : f32 to vector<2x1xf32>
    %345 = arith.subf %344, %308 : vector<2x1xf32>
    %346 = vector.broadcast %345 : vector<2x1xf32> to vector<2x32xf32>
    %347 = arith.mulf %346, %299 : vector<2x32xf32>
    %348 = arith.addf %339, %347 : vector<2x32xf32>
    %c7_i32_111 = arith.constant 7 : i32
    %c0_i32_112 = arith.constant 0 : i32
    %349 = arith.cmpi eq, %arg0, %c0_i32_112 : i32
    %c7_i32_113 = arith.constant 7 : i32
    %350 = arith.subi %c7_i32_113, %c7_i32_111 : i32
    %351 = arith.select %349, %c7_i32_111, %350 : i32
    %c0_114 = arith.constant 0 : index
    %352 = arith.index_cast %351 : i32 to index
    %c0_115 = arith.constant 0 : index
    %c0_116 = arith.constant 0 : index
    %353 = vector.load %arg1[%c0_114, %352, %c0_115, %c0_116] : memref<1x8x2x96xf32, #tpu.memory_space<vmem>>, vector<1x1x2x96xf32>
    %354 = vector.shape_cast %353 : vector<1x1x2x96xf32> to vector<2x96xf32>
    %355 = arith.index_cast %351 : i32 to index
    %c0_117 = arith.constant 0 : index
    %c0_118 = arith.constant 0 : index
    %356 = vector.load %arg2[%355, %c0_117, %c0_118] : memref<8x2x1xf32, #tpu.memory_space<vmem>>, vector<1x2x1xf32>
    %357 = vector.shape_cast %356 : vector<1x2x1xf32> to vector<2x1xf32>
    %cst_119 = arith.constant dense<0.000000e+00> : vector<2x96xf32>
    %358 = tpu.matmul %348, %1, %cst_119 {dimension_numbers = #tpu.dot_dimension_numbers<[1], [0], [0], [1], [0, 0, 1, 1], [], []>} : vector<2x32xf32>, vector<32x96xf32>, vector<2x96xf32> -> vector<2x96xf32>
    %359 = vector.broadcast %3 : vector<1x96xf32> to vector<2x96xf32>
    %360 = arith.addf %358, %359 : vector<2x96xf32>
    %361 = vector.extract_strided_slice %354 {offsets = [0, 0], sizes = [2, 32], strides = [1, 1]} : vector<2x96xf32> to vector<2x32xf32>
    %362 = vector.extract_strided_slice %360 {offsets = [0, 0], sizes = [2, 32], strides = [1, 1]} : vector<2x96xf32> to vector<2x32xf32>
    %363 = arith.addf %361, %362 : vector<2x32xf32>
    %364 = arith.negf %363 : vector<2x32xf32>
    %365 = math.exp %364 : vector<2x32xf32>
    %cst_120 = arith.constant 1.000000e+00 : f32
    %366 = vector.broadcast %cst_120 : f32 to vector<2x32xf32>
    %367 = arith.addf %366, %365 : vector<2x32xf32>
    %368 = arith.divf %366, %367 : vector<2x32xf32>
    %369 = vector.extract_strided_slice %354 {offsets = [0, 32], sizes = [2, 32], strides = [1, 1]} : vector<2x96xf32> to vector<2x32xf32>
    %370 = vector.extract_strided_slice %360 {offsets = [0, 32], sizes = [2, 32], strides = [1, 1]} : vector<2x96xf32> to vector<2x32xf32>
    %371 = arith.addf %369, %370 : vector<2x32xf32>
    %372 = arith.negf %371 : vector<2x32xf32>
    %373 = math.exp %372 : vector<2x32xf32>
    %cst_121 = arith.constant 1.000000e+00 : f32
    %374 = vector.broadcast %cst_121 : f32 to vector<2x32xf32>
    %375 = arith.addf %374, %373 : vector<2x32xf32>
    %376 = arith.divf %374, %375 : vector<2x32xf32>
    %377 = vector.extract_strided_slice %354 {offsets = [0, 64], sizes = [2, 32], strides = [1, 1]} : vector<2x96xf32> to vector<2x32xf32>
    %378 = vector.extract_strided_slice %360 {offsets = [0, 64], sizes = [2, 32], strides = [1, 1]} : vector<2x96xf32> to vector<2x32xf32>
    %379 = arith.mulf %368, %378 : vector<2x32xf32>
    %380 = arith.addf %377, %379 : vector<2x32xf32>
    %381 = math.tanh %380 : vector<2x32xf32>
    %cst_122 = arith.constant 1.000000e+00 : f32
    %382 = vector.broadcast %cst_122 : f32 to vector<2x32xf32>
    %383 = arith.subf %382, %376 : vector<2x32xf32>
    %384 = arith.mulf %383, %381 : vector<2x32xf32>
    %385 = arith.mulf %376, %348 : vector<2x32xf32>
    %386 = arith.addf %384, %385 : vector<2x32xf32>
    %387 = vector.broadcast %357 : vector<2x1xf32> to vector<2x32xf32>
    %388 = arith.mulf %387, %386 : vector<2x32xf32>
    %c0_123 = arith.constant 0 : index
    %389 = arith.index_cast %351 : i32 to index
    %c0_124 = arith.constant 0 : index
    %c0_125 = arith.constant 0 : index
    %390 = vector.load %arg6[%c0_123, %389, %c0_124, %c0_125] : memref<1x8x2x32xf32, #tpu.memory_space<vmem>>, vector<1x1x2x32xf32>
    %391 = vector.shape_cast %390 : vector<1x1x2x32xf32> to vector<2x32xf32>
    %392 = vector.shape_cast %388 : vector<2x32xf32> to vector<1x1x2x32xf32>
    tpu.vector_store %arg6[%c0_123, %389, %c0_124, %c0_125], %392 {strides = array<i32>} : memref<1x8x2x32xf32, #tpu.memory_space<vmem>>, vector<1x1x2x32xf32>,
    %cst_126 = arith.constant 1.000000e+00 : f32
    %393 = vector.broadcast %cst_126 : f32 to vector<2x1xf32>
    %394 = arith.subf %393, %357 : vector<2x1xf32>
    %395 = vector.broadcast %394 : vector<2x1xf32> to vector<2x32xf32>
    %396 = arith.mulf %395, %348 : vector<2x32xf32>
    %397 = arith.addf %388, %396 : vector<2x32xf32>
    %c8_i32 = arith.constant 8 : i32
    %c0_127 = arith.constant 0 : index
    %c0_128 = arith.constant 0 : index
    %c0_129 = arith.constant 0 : index
    %398 = vector.load %arg7[%c0_127, %c0_128, %c0_129] : memref<1x2x32xf32, #tpu.memory_space<vmem>>, vector<1x2x32xf32>
    %399 = vector.shape_cast %398 : vector<1x2x32xf32> to vector<2x32xf32>
    %400 = vector.shape_cast %397 : vector<2x32xf32> to vector<1x2x32xf32>
    tpu.vector_store %arg7[%c0_127, %c0_128, %c0_129], %400 {strides = array<i32>} : memref<1x2x32xf32, #tpu.memory_space<vmem>>, vector<1x2x32xf32>,
    return
  }
  func.func @transform_0(%arg0: i32) -> (i32, i32, i32, i32) {
    %c0_i32 = arith.constant 0 : i32
    %c0_i32_0 = arith.constant 0 : i32
    %c0_i32_1 = arith.constant 0 : i32
    %c0_i32_2 = arith.constant 0 : i32
    return %arg0, %c0_i32, %c0_i32_0, %c0_i32_1 : i32, i32, i32, i32
  }
  func.func @transform_1(%arg0: i32) -> (i32, i32, i32) {
    %c0_i32 = arith.constant 0 : i32
    %c0_i32_0 = arith.constant 0 : i32
    %c0_i32_1 = arith.constant 0 : i32
    %c0_i32_2 = arith.constant 0 : i32
    return %c0_i32, %c0_i32_0, %c0_i32_1 : i32, i32, i32
  }
  func.func @transform_2(%arg0: i32) -> (i32, i32, i32) {
    %c0_i32 = arith.constant 0 : i32
    %c0_i32_0 = arith.constant 0 : i32
    %c0_i32_1 = arith.constant 0 : i32
    return %arg0, %c0_i32, %c0_i32_0 : i32, i32, i32
  }
  func.func @transform_3(%arg0: i32) -> (i32, i32, i32) {
    %c0_i32 = arith.constant 0 : i32
    %c0_i32_0 = arith.constant 0 : i32
    %c0_i32_1 = arith.constant 0 : i32
    return %arg0, %c0_i32, %c0_i32_0 : i32, i32, i32
  }
  func.func @transform_4(%arg0: i32) -> (i32, i32, i32) {
    %c0_i32 = arith.constant 0 : i32
    %c0_i32_0 = arith.constant 0 : i32
    %c0_i32_1 = arith.constant 0 : i32
    return %arg0, %c0_i32, %c0_i32_0 : i32, i32, i32
  }
  func.func @transform_5(%arg0: i32) -> (i32, i32, i32, i32) {
    %c0_i32 = arith.constant 0 : i32
    %c0_i32_0 = arith.constant 0 : i32
    %c0_i32_1 = arith.constant 0 : i32
    %c0_i32_2 = arith.constant 0 : i32
    return %arg0, %c0_i32, %c0_i32_0, %c0_i32_1 : i32, i32, i32, i32
  }
  func.func @transform_6(%arg0: i32) -> (i32, i32, i32) {
    %c0_i32 = arith.constant 0 : i32
    %c0_i32_0 = arith.constant 0 : i32
    %c0_i32_1 = arith.constant 0 : i32
    return %arg0, %c0_i32, %c0_i32_0 : i32, i32, i32
  }
}

</mosaic_0001>

<llo_original>
// kernel: tpu_custom_call.1
$region0: #{tpu_custom_call.1}
  #allocation0 [shape = 'u32[]', space=smem, size = 0x4, offset = 0x4, fixed_abs, tag = 'smem constant byte address 0x4 - core index']
  #allocation1 [shape = 'u32[72,128]{1,0:T(1,128)}', space=vmem, size = 0x9000, scoped, tag = 'internal scratch']
  %s0 = inlined_call_operand.hbm [shape: f32[2,8,2,96], index: 0, kind: input, shape index: {}]
  %s1 = inlined_call_operand.vmem [shape: f32[8,2,1], index: 1, kind: input, shape index: {}]
  %s2 = inlined_call_operand.hbm [shape: f32[2,32,96], index: 2, kind: input, shape index: {}]
  %s3 = inlined_call_operand.vmem [shape: f32[2,1,96], index: 3, kind: input, shape index: {}]
  %s4 = inlined_call_operand.vmem [shape: f32[2,2,32], index: 4, kind: input, shape index: {}]
  %s5 = inlined_call_operand.hbm [shape: f32[2,8,2,32], index: 5, kind: output, shape index: {0}]
  %s6 = inlined_call_operand.hbm [shape: f32[2,2,32], index: 6, kind: output, shape index: {1}]
  %7 = xla_tuple %s5, %s6
  %s8 = sld [smem:[#allocation0]]
  $region69: #{tpu_custom_call.1} parent=0
    _
  %s10 = ssub.s32 1, %s8
  %s11 = scalar_select 0, %s10, %s8
  $region1: #{tpu_custom_call.1} parent=0
    #allocation2 [shape = 'u8[16384]{0}', space=vmem, size = 0x4000, scoped, tag = 'input window, operand 0']
    #allocation3 [shape = 's32[2]{0}', space=sflag, size = 0x8, scoped, tag = 'scoped memory for tpu_custom_call.1']
    #allocation4 [shape = 's32[2]{0}', space=sflag, size = 0x8, scoped, tag = 'scoped memory for tpu_custom_call.1']
    #allocation5 [shape = 'u8[32768]{0}', space=vmem, size = 0x8000, scoped, tag = 'input window, operand 2']
    #allocation6 [shape = 's32[2]{0}', space=sflag, size = 0x8, scoped, tag = 'scoped memory for tpu_custom_call.1']
    #allocation7 [shape = 'u8[16384]{0}', space=vmem, size = 0x4000, scoped, tag = 'output window, operand 0']
    #allocation8 [shape = 'u8[2048]{0}', space=vmem, size = 0x800, scoped, tag = 'output window, operand 1']
    #allocation9 [shape = 's32[2]{0}', space=sflag, size = 0x8, scoped, tag = 'scoped memory for tpu_custom_call.1']
    %12 = vsyncpa [#allocation3], 0
    %s13 = scalar_lea.sflag [#allocation3], 1
    %14 = vsyncpa %s13, 0
    %15 = vsyncpa [#allocation6], 0
    %s16 = scalar_lea.sflag [#allocation6], 1
    %17 = vsyncpa %s16, 0
    %18 = vsyncpa [#allocation4], 0
    %s19 = scalar_lea.sflag [#allocation4], 1
    %20 = vsyncpa %s19, 0
    %21 = vsyncpa [#allocation9], 0
    %s22 = scalar_lea.sflag [#allocation9], 1
    %23 = vsyncpa %s22, 0
    loop: start=0, step=1, limit=4
    $region2: #{tpu_custom_call.1} parent=1 // loop_pre_header
      _
    $region3: #{tpu_custom_call.1} parent=1 // loop_header
      %s25 = sphi 0, %s29
      %p26 = scmp.ge.s32.totalorder %s25, 4
      %s35 = sphi 0, %s37
      %s38 = sphi 0, %s35
      %s39 = sphi 0, %s38
      %s55 = sphi 0, %s39
      %s59 = sphi 0, %s59
      %s61 = sphi 0, %s59
      %s62 = sphi 0, %s61
      %s76 = sphi 0, %s62
      %s82 = sphi 0, %s84
      %s85 = sphi 0, %s82
      %s86 = sphi 0, %s85
      %s102 = sphi 0, %s86
      %s108 = sphi 0, %s110
      %s111 = sphi 0, %s108
      %s112 = sphi 0, %s111
      %s128 = sphi 0, %s112
      %s134 = sphi 0, %s136
      %s137 = sphi 0, %s134
      %s138 = sphi 0, %s137
      %s154 = sphi 0, %s138
      %s160 = sphi 0, %s162
      %s163 = sphi 0, %s160
      %s164 = sphi 0, %s163
      %s180 = sphi 0, %s164
      %s186 = sphi 0, %s188
      %s189 = sphi 0, %s186
      %s190 = sphi 0, %s189
      %s206 = sphi 0, %s190
    $region4: #{tpu_custom_call.1} parent=1 // loop_header_branch
      %28 = sbr.rel (%p26) target = $region8
    $region5: #{tpu_custom_call.1} parent=1 // loop_body
      %s30 = ssub.s32 %s25, 1
      %s31 = ssub.s32 %s25, 2
      %s32 = sadd.s32 %s25, 1
      %s33 = ssub.s32 %s25, %s32
      %p34 = scmp.eq.s32.totalorder %s33, 0
      %s36 = sadd.s32 %s35, 1
      %s37 = scalar_select %p34, %s35, %s36
      %p40 = pneg %p34
      %p41 = scmp.eq.s32.totalorder %s25, 1
      %p42 = por %p40, %p41
      %p43 = scmp.ne.s32.totalorder %s35, %s38
      %p44 = scmp.eq.s32.totalorder %s25, 0
      %p45 = por %p43, %p44
      %p46 = scmp.ne.s32.totalorder %s35, %s38
      %p47 = scmp.eq.s32.totalorder %s30, 1
      %p48 = por %p46, %p47
      %p49 = scmp.ne.s32.totalorder %s38, %s39
      %p50 = scmp.eq.s32.totalorder %s30, 0
      %p51 = por %p49, %p50
      %p52 = scmp.ne.s32.totalorder %s38, %s39
      %p53 = scmp.eq.s32.totalorder %s31, 1
      %p54 = por %p52, %p53
      %p56 = scmp.ne.s32.totalorder %s39, %s55
      %p57 = scmp.eq.s32.totalorder %s31, 0
      %p58 = por %p56, %p57
      %s60 = sadd.s32 %s59, 1
      %p63 = scmp.eq.s32.totalorder %s25, 1
      %p64 = scmp.ne.s32.totalorder %s59, %s61
      %p65 = scmp.eq.s32.totalorder %s25, 0
      %p66 = por %p64, %p65
      %p67 = scmp.ne.s32.totalorder %s59, %s61
      %p68 = scmp.eq.s32.totalorder %s30, 1
      %p69 = por %p67, %p68
      %p70 = scmp.ne.s32.totalorder %s61, %s62
      %p71 = scmp.eq.s32.totalorder %s30, 0
      %p72 = por %p70, %p71
      %p73 = scmp.ne.s32.totalorder %s61, %s62
      %p74 = scmp.eq.s32.totalorder %s31, 1
      %p75 = por %p73, %p74
      %p77 = scmp.ne.s32.totalorder %s62, %s76
      %p78 = scmp.eq.s32.totalorder %s31, 0
      %p79 = por %p77, %p78
      %s80 = ssub.s32 %s25, %s32
      %p81 = scmp.eq.s32.totalorder %s80, 0
      %s83 = sadd.s32 %s82, 1
      %s84 = scalar_select %p81, %s82, %s83
      %p87 = pneg %p81
      %p88 = scmp.eq.s32.totalorder %s25, 1
      %p89 = por %p87, %p88
      %p90 = scmp.ne.s32.totalorder %s82, %s85
      %p91 = scmp.eq.s32.totalorder %s25, 0
      %p92 = por %p90, %p91
      %p93 = scmp.ne.s32.totalorder %s82, %s85
      %p94 = scmp.eq.s32.totalorder %s30, 1
      %p95 = por %p93, %p94
      %p96 = scmp.ne.s32.totalorder %s85, %s86
      %p97 = scmp.eq.s32.totalorder %s30, 0
      %p98 = por %p96, %p97
      %p99 = scmp.ne.s32.totalorder %s85, %s86
      %p100 = scmp.eq.s32.totalorder %s31, 1
      %p101 = por %p99, %p100
      %p103 = scmp.ne.s32.totalorder %s86, %s102
      %p104 = scmp.eq.s32.totalorder %s31, 0
      %p105 = por %p103, %p104
      %s106 = ssub.s32 %s25, %s32
      %p107 = scmp.eq.s32.totalorder %s106, 0
      %s109 = sadd.s32 %s108, 1
      %s110 = scalar_select %p107, %s108, %s109
      %p113 = pneg %p107
      %p114 = scmp.eq.s32.totalorder %s25, 1
      %p115 = por %p113, %p114
      %p116 = scmp.ne.s32.totalorder %s108, %s111
      %p117 = scmp.eq.s32.totalorder %s25, 0
      %p118 = por %p116, %p117
      %p119 = scmp.ne.s32.totalorder %s108, %s111
      %p120 = scmp.eq.s32.totalorder %s30, 1
      %p121 = por %p119, %p120
      %p122 = scmp.ne.s32.totalorder %s111, %s112
      %p123 = scmp.eq.s32.totalorder %s30, 0
      %p124 = por %p122, %p123
      %p125 = scmp.ne.s32.totalorder %s111, %s112
      %p126 = scmp.eq.s32.totalorder %s31, 1
      %p127 = por %p125, %p126
      %p129 = scmp.ne.s32.totalorder %s112, %s128
      %p130 = scmp.eq.s32.totalorder %s31, 0
      %p131 = por %p129, %p130
      %s132 = ssub.s32 %s25, %s32
      %p133 = scmp.eq.s32.totalorder %s132, 0
      %s135 = sadd.s32 %s134, 1
      %s136 = scalar_select %p133, %s134, %s135
      %p139 = pneg %p133
      %p140 = scmp.eq.s32.totalorder %s25, 1
      %p141 = por %p139, %p140
      %p142 = scmp.ne.s32.totalorder %s134, %s137
      %p143 = scmp.eq.s32.totalorder %s25, 0
      %p144 = por %p142, %p143
      %p145 = scmp.ne.s32.totalorder %s134, %s137
      %p146 = scmp.eq.s32.totalorder %s30, 1
      %p147 = por %p145, %p146
      %p148 = scmp.ne.s32.totalorder %s137, %s138
      %p149 = scmp.eq.s32.totalorder %s30, 0
      %p150 = por %p148, %p149
      %p151 = scmp.ne.s32.totalorder %s137, %s138
      %p152 = scmp.eq.s32.totalorder %s31, 1
      %p153 = por %p151, %p152
      %p155 = scmp.ne.s32.totalorder %s138, %s154
      %p156 = scmp.eq.s32.totalorder %s31, 0
      %p157 = por %p155, %p156
      %s158 = ssub.s32 %s25, %s32
      %p159 = scmp.eq.s32.totalorder %s158, 0
      %s161 = sadd.s32 %s160, 1
      %s162 = scalar_select %p159, %s160, %s161
      %p165 = pneg %p159
      %p166 = scmp.eq.s32.totalorder %s25, 1
      %p167 = por %p165, %p166
      %p168 = scmp.ne.s32.totalorder %s160, %s163
      %p169 = scmp.eq.s32.totalorder %s25, 0
      %p170 = por %p168, %p169
      %p171 = scmp.ne.s32.totalorder %s160, %s163
      %p172 = scmp.eq.s32.totalorder %s30, 1
      %p173 = por %p171, %p172
      %p174 = scmp.ne.s32.totalorder %s163, %s164
      %p175 = scmp.eq.s32.totalorder %s30, 0
      %p176 = por %p174, %p175
      %p177 = scmp.ne.s32.totalorder %s163, %s164
      %p178 = scmp.eq.s32.totalorder %s31, 1
      %p179 = por %p177, %p178
      %p181 = scmp.ne.s32.totalorder %s164, %s180
      %p182 = scmp.eq.s32.totalorder %s31, 0
      %p183 = por %p181, %p182
      %s184 = ssub.s32 %s25, %s32
      %p185 = scmp.eq.s32.totalorder %s184, 0
      %s187 = sadd.s32 %s186, 1
      %s188 = scalar_select %p185, %s186, %s187
      %p191 = pneg %p185
      %p192 = scmp.eq.s32.totalorder %s25, 1
      %p193 = por %p191, %p192
      %p194 = scmp.ne.s32.totalorder %s186, %s189
      %p195 = scmp.eq.s32.totalorder %s25, 0
      %p196 = por %p194, %p195
      %p197 = scmp.ne.s32.totalorder %s186, %s189
      %p198 = scmp.eq.s32.totalorder %s30, 1
      %p199 = por %p197, %p198
      %p200 = scmp.ne.s32.totalorder %s189, %s190
      %p201 = scmp.eq.s32.totalorder %s30, 0
      %p202 = por %p200, %p201
      %p203 = scmp.ne.s32.totalorder %s189, %s190
      %p204 = scmp.eq.s32.totalorder %s31, 1
      %p205 = por %p203, %p204
      %p207 = scmp.ne.s32.totalorder %s190, %s206
      %p208 = scmp.eq.s32.totalorder %s31, 0
      %p209 = por %p207, %p208
      %p210 = scmp.le.s32.totalorder 1, %s25
      %p211 = scmp.lt.s32.totalorder %s25, 3
      %p212 = pnand %p210, %p211
      %p213 = pneg %p212
      // Predicated region
      $region9: #{tpu_custom_call.1} parent=5 // pred_check
        _
      $region10: #{tpu_custom_call.1} parent=5 // pred_check_branch
        %215 = sbr.rel (%p212) target = $region12
      $region11: #{tpu_custom_call.1} parent=5 // pred_region
        %s216 = ssub.s32 %s25, 1
        // Predicated region
        $region13: #{tpu_custom_call.1} parent=11 // pred_check
          %p217 = pneg %p72
        $region14: #{tpu_custom_call.1} parent=11 // pred_check_branch
          %219 = sbr.rel (%p217) target = $region16
        $region15: #{tpu_custom_call.1} parent=11 // pred_region
          _
        $region16: #{tpu_custom_call.1} parent=11 // pred_fallthru
          _
      $region12: #{tpu_custom_call.1} parent=5 // pred_fallthru
        _
      %p220 = scmp.lt.s32.totalorder %s25, 2
      // Predicated region
      $region17: #{tpu_custom_call.1} parent=5 // pred_check
        %p221 = pneg %p220
      $region18: #{tpu_custom_call.1} parent=5 // pred_check_branch
        %223 = sbr.rel (%p221) target = $region20
      $region19: #{tpu_custom_call.1} parent=5 // pred_region
        // Predicated region
        $region21: #{tpu_custom_call.1} parent=19 // pred_check
          %p224 = pneg %p45
        $region22: #{tpu_custom_call.1} parent=19 // pred_check_branch
          %226 = sbr.rel (%p224) target = $region24
        $region23: #{tpu_custom_call.1} parent=19 // pred_region
          %s227 = sand.u32 %s35, 1
          %s228 = scalar_lea.sflag [#allocation3], %s227
          %s229 = sand.u32 %s35, 1
          %s230 = smul.addr %s229, 16
          %s231 = scalar_lea.vmem [#allocation2], %s230
          %233 = vsyncadd %s228, 0
          %s234 = smul.addr %s25, 8
          %s235 = smul.addr %s234, 2
          %s236 = scalar_lea.hbm %s0, %s235
          %s237 = sshll.u32 %s236, 4
          %s238 = int_to_ptr.hbm [resolvable:$true] %s237
          %s239 = sshll.u32 %s231, 4
          %s240 = int_to_ptr.vmem [resolvable:$true] %s239
          %245 = dma.hbm_to_vmem [thread:$0]  %s238, 256, %s240, %s228, 32, 32, 2
        $region24: #{tpu_custom_call.1} parent=19 // pred_fallthru
          _
        // Predicated region
        $region25: #{tpu_custom_call.1} parent=19 // pred_check
          %p246 = pneg %p92
        $region26: #{tpu_custom_call.1} parent=19 // pred_check_branch
          %248 = sbr.rel (%p246) target = $region28
        $region27: #{tpu_custom_call.1} parent=19 // pred_region
          %s249 = sand.u32 %s82, 1
          %s250 = scalar_lea.sflag [#allocation6], %s249
          %s251 = sand.u32 %s82, 1
          %s252 = smul.addr %s251, 32
          %s253 = scalar_lea.vmem [#allocation5], %s252
          %255 = vsyncadd %s250, 0
          %s256 = smul.addr %s25, 4
          %s257 = smul.addr %s256, 8
          %s258 = scalar_lea.hbm %s2, %s257
          %s259 = sshll.u32 %s258, 4
          %s260 = int_to_ptr.hbm [resolvable:$true] %s259
          %s261 = sshll.u32 %s253, 4
          %s262 = int_to_ptr.vmem [resolvable:$true] %s261
          %267 = dma.hbm_to_vmem [thread:$0]  %s260, 512, %s262, %s250, 128, 128, 8
        $region28: #{tpu_custom_call.1} parent=19 // pred_fallthru
          _
        // Predicated region
        $region29: #{tpu_custom_call.1} parent=19 // pred_check
          %p268 = pneg %p118
        $region30: #{tpu_custom_call.1} parent=19 // pred_check_branch
          %270 = sbr.rel (%p268) target = $region32
        $region31: #{tpu_custom_call.1} parent=19 // pred_region
          %p271 = scmp.lt.s32.totalorder %s25, 1
          %s272 = scalar_select %p271, %s25, 1
          %s273 = scalar_lea.vmem %s3, %s272
        $region32: #{tpu_custom_call.1} parent=19 // pred_fallthru
          _
        // Predicated region
        $region33: #{tpu_custom_call.1} parent=19 // pred_check
          %p274 = pneg %p144
        $region34: #{tpu_custom_call.1} parent=19 // pred_check_branch
          %276 = sbr.rel (%p274) target = $region36
        $region35: #{tpu_custom_call.1} parent=19 // pred_region
          %p277 = scmp.lt.s32.totalorder %s25, 1
          %s278 = scalar_select %p277, %s25, 1
          %s279 = smul.addr %s278, 2
          %s280 = scalar_lea.vmem %s4, %s279
        $region36: #{tpu_custom_call.1} parent=19 // pred_fallthru
          _
      $region20: #{tpu_custom_call.1} parent=5 // pred_fallthru
        _
      %p281 = scmp.le.s32.totalorder 1, %s25
      %p282 = scmp.lt.s32.totalorder %s25, 3
      %p283 = pnand %p281, %p282
      %p284 = pneg %p283
      // Predicated region
      $region37: #{tpu_custom_call.1} parent=5 // pred_check
        _
      $region38: #{tpu_custom_call.1} parent=5 // pred_check_branch
        %286 = sbr.rel (%p283) target = $region40
      $region39: #{tpu_custom_call.1} parent=5 // pred_region
        %s287 = ssub.s32 %s25, 1
        %s288 = sand.u32 %s38, 1
        %s289 = scalar_lea.sflag [#allocation3], %s288
        %s290 = sand.u32 %s38, 1
        %s291 = smul.addr %s290, 16
        %s292 = scalar_lea.vmem [#allocation2], %s291
        // Predicated region
        $region41: #{tpu_custom_call.1} parent=39 // pred_check
          %p293 = pneg %p51
        $region42: #{tpu_custom_call.1} parent=39 // pred_check_branch
          %295 = sbr.rel (%p293) target = $region44
        $region43: #{tpu_custom_call.1} parent=39 // pred_region
          %297 = dma.done %s289, 256
        $region44: #{tpu_custom_call.1} parent=39 // pred_fallthru
          _
        %s298 = sand.u32 %s85, 1
        %s299 = scalar_lea.sflag [#allocation6], %s298
        %s300 = sand.u32 %s85, 1
        %s301 = smul.addr %s300, 32
        %s302 = scalar_lea.vmem [#allocation5], %s301
        // Predicated region
        $region45: #{tpu_custom_call.1} parent=39 // pred_check
          %p303 = pneg %p98
        $region46: #{tpu_custom_call.1} parent=39 // pred_check_branch
          %305 = sbr.rel (%p303) target = $region48
        $region47: #{tpu_custom_call.1} parent=39 // pred_region
          %307 = dma.done %s299, 512
        $region48: #{tpu_custom_call.1} parent=39 // pred_fallthru
          _
        %s308 = sand.u32 %s38, 1
        %s309 = scalar_lea.sflag [#allocation3], %s308
        %s310 = sand.u32 %s38, 1
        %s311 = smul.addr %s310, 16
        %s312 = scalar_lea.vmem [#allocation2], %s311
        %p313 = pneg %p51
        %p314 = pneg %p48
        %p315 = pneg %p72
        %p316 = pneg %p69
        %s317 = sand.u32 %s85, 1
        %s318 = scalar_lea.sflag [#allocation6], %s317
        %s319 = sand.u32 %s85, 1
        %s320 = smul.addr %s319, 32
        %s321 = scalar_lea.vmem [#allocation5], %s320
        %p322 = pneg %p98
        %p323 = pneg %p95
        %p324 = scmp.lt.s32.totalorder %s30, 1
        %s325 = scalar_select %p324, %s30, 1
        %s326 = scalar_lea.vmem %s3, %s325
        %p327 = pneg %p124
        %p328 = pneg %p121
        %p329 = scmp.lt.s32.totalorder %s30, 1
        %s330 = scalar_select %p329, %s30, 1
        %s331 = smul.addr %s330, 2
        %s332 = scalar_lea.vmem %s4, %s331
        %p333 = pneg %p150
        %p334 = pneg %p147
        %p335 = pneg %p176
        %p336 = pneg %p173
        %s337 = sand.u32 %s163, 1
        %s338 = scalar_lea.sflag [#allocation4], %s337
        %s339 = sand.u32 %s163, 1
        %s340 = smul.addr %s339, 16
        %s341 = scalar_lea.vmem [#allocation7], %s340
        %p342 = pneg %p202
        %p343 = pneg %p199
        %s344 = sand.u32 %s189, 1
        %s345 = scalar_lea.sflag [#allocation9], %s344
        %s346 = sand.u32 %s189, 1
        %s347 = smul.addr %s346, 2
        %s348 = scalar_lea.vmem [#allocation8], %s347
        %p349 = scmp.lt.s32.totalorder %s30, 1
        %s350 = scalar_select %p349, %s30, 1
        %s351 = scalar_lea.vmem %s3, %s350
        %p352 = scmp.lt.s32.totalorder %s30, 1
        %s353 = scalar_select %p352, %s30, 1
        %s354 = smul.addr %s353, 2
        %s355 = scalar_lea.vmem %s4, %s354
        %v356 = vld [vmem:[%s302] sm:$0xff]
        %v357 = vld [vmem:[%s302 + $0x8] sm:$0xff]
        %v358 = vld [vmem:[%s302 + $0x10] sm:$0xff]
        %v359 = vld [vmem:[%s302 + $0x18] sm:$0xff]
        %v360 = vld [vmem:[%s351] sm:$0x1]
        %v361 = vld [vmem:[%s355] sm:$0x3]
        %p362 = scmp.eq.s32.totalorder %s30, 0
        %s363 = scalar_select %p362, 0, 7
        %s364 = smul.u32 %s363, 2
        %s365 = scalar_lea.vmem %s292, %s364 [#allocation2]
        %v366 = vld [vmem:[%s365] sm:$0x3]
        %s367 = scalar_lea.vmem %s1, %s364
        %v368 = vld [vmem:[%s367] sm:$0x3]
        %v370 = vperm.slane %v360, 0
        %vm372 = vcmask 261120
        %v374 = vsel %vm372, %v361, 0
        %376 = vmatpush.msra.mxu0 0.0
        %377 = vmatpush.msra.mxu0 0.0
        %378 = vmatpush.msra.mxu0 0.0
        %379 = vmatpush.msra.mxu0 0.0
        %380 = vmatpush.msra.mxu0 0.0
        %381 = vmatpush.msra.mxu0 0.0
        %382 = vmatpush.msra.mxu0 0.0
        %383 = vmatpush.msra.mxu0 0.0
        %384 = vmatpush.msra.mxu0 0.0
        %385 = vmatpush.msra.mxu0 0.0
        %386 = vmatpush.msra.mxu0 0.0
        %387 = vmatpush.msra.mxu0 0.0
        %388 = vmatpush.msra.mxu0 %v359
        %389 = vmatpush.msra.mxu0 %v358
        %390 = vmatpush.msra.mxu0 %v357
        %391 = vmatpush.msra.mxu0 %v356
        %392 = vmatmul.f32.gmra.mxu0 %v374
        %v393 = vpop.f32.mrf.mxu0
        %v394 = vadd.f32 %v370, %v393
        %395 = vdwg.mxu0
        %v396 = vadd.f32 %v366, %v394
        %v397 = vxor.u32 %v396, 2147483648
        %v398 = vmul.f32 %v397, 1.442695
        %v399 = vpow.pop %v398
        %v400 = vadd.f32 %v399, 1.0
        %v401 = vrcp.pop %v400
        %v402 = vmul.f32 %v400, %v401
        %v403 = vsub.f32 1.0, %v402
        %v404 = vmul.f32 %v401, %v403
        %v405 = vadd.f32 %v401, %v404
        %vm406 = vweird.f32 %v400
        %vm407 = vweird.f32 %v401
        %vm408 = vmor %vm406, %vm407
        %v409 = vsel %vm408, %v401, %v405
        %v410 = vand.u32 2147483647, %v400
        %vm411 = vcmp.eq.f32.partialorder %v410, 8.507059e+37
        %v412 = vand.u32 %v400, 2147483648
        %v413 = vor.u32 1.1754944e-38, %v412
        %v414 = vsel %vm411, %v413, %v409
        %v415 = vmul.f32 1.0, %v414
        %417 = vrot.lane.b32.xlu0 %v394, 64
        %v418 = vpop.permute.xlu0 %417
        %v420 = vmul.f32 %v415, %v418
        %422 = vrot.lane.b32.xlu0 %v420, 64
        %v423 = vpop.permute.xlu0 %422
        %v425 = vadd.f32 %v366, %v423
        %v426 = vtanh.pop %v425
        %v427 = vsub.f32 1.0, %v415
        %429 = vrot.lane.b32.xlu0 %v426, 96
        %v430 = vpop.permute.xlu0 %429
        %v432 = vmul.f32 %v427, %v430
        %433 = vrot.lane.b32.xlu0 %v361, 32
        %v434 = vpop.permute.xlu0 %433
        %v436 = vmul.f32 %v415, %v434
        %v437 = vadd.f32 %v432, %v436
        %439 = vset.pattern.permute.xlu0 0
        %440 = vperm.xlu0 %439, %v368
        %v441 = vpop.permute.xlu0 %440
        %v443 = vmul.f32 %v441, %v437
        %445 = vrot.lane.b32.xlu0 %v443, 96
        %v446 = vpop.permute.xlu0 %445
        %s448 = scalar_lea.vmem %s341, %s364 [#allocation7]
        %vm449 = vcmask 254976
        %450 = vst.msk [vmem:[%s448] sm:$0x3] %vm449, %v446
        %v451 = vsub.f32 1.0, %v368
        %453 = vset.pattern.permute.xlu0 0
        %454 = vperm.xlu0 %453, %v451
        %v455 = vpop.permute.xlu0 %454
        %v457 = vmul.f32 %v455, %v361
        %459 = vrot.lane.b32.xlu0 %v457, 32
        %v460 = vpop.permute.xlu0 %459
        %v462 = vadd.f32 %v443, %v460
        %s463 = scalar_select %p362, 1, 6
        %s464 = smul.u32 %s463, 2
        %s465 = scalar_lea.vmem %s292, %s464 [#allocation2]
        %v466 = vld [vmem:[%s465] sm:$0x3]
        %s467 = scalar_lea.vmem %s1, %s464
        %v468 = vld [vmem:[%s467] sm:$0x3]
        %470 = vrot.lane.b32.xlu0 %v462, 96
        %v471 = vpop.permute.xlu0 %470
        %v472 = vsel %vm372, %v471, 0
        %474 = vmatpush.msra.mxu0 0.0
        %475 = vmatpush.msra.mxu0 0.0
        %476 = vmatpush.msra.mxu0 0.0
        %477 = vmatpush.msra.mxu0 0.0
        %478 = vmatpush.msra.mxu0 0.0
        %479 = vmatpush.msra.mxu0 0.0
        %480 = vmatpush.msra.mxu0 0.0
        %481 = vmatpush.msra.mxu0 0.0
        %482 = vmatpush.msra.mxu0 0.0
        %483 = vmatpush.msra.mxu0 0.0
        %484 = vmatpush.msra.mxu0 0.0
        %485 = vmatpush.msra.mxu0 0.0
        %486 = vmatpush.msra.mxu0 %v359
        %487 = vmatpush.msra.mxu0 %v358
        %488 = vmatpush.msra.mxu0 %v357
        %489 = vmatpush.msra.mxu0 %v356
        %490 = vmatmul.f32.gmra.mxu0 %v472
        %v491 = vpop.f32.mrf.mxu0
        %v492 = vadd.f32 %v370, %v491
        %493 = vdwg.mxu0
        %v494 = vadd.f32 %v466, %v492
        %v495 = vxor.u32 %v494, 2147483648
        %v496 = vmul.f32 %v495, 1.442695
        %v497 = vpow.pop %v496
        %v498 = vadd.f32 %v497, 1.0
        %v499 = vrcp.pop %v498
        %v500 = vmul.f32 %v498, %v499
        %v501 = vsub.f32 1.0, %v500
        %v502 = vmul.f32 %v499, %v501
        %v503 = vadd.f32 %v499, %v502
        %vm504 = vweird.f32 %v498
        %vm505 = vweird.f32 %v499
        %vm506 = vmor %vm504, %vm505
        %v507 = vsel %vm506, %v499, %v503
        %v508 = vand.u32 2147483647, %v498
        %vm509 = vcmp.eq.f32.partialorder %v508, 8.507059e+37
        %v510 = vand.u32 %v498, 2147483648
        %v511 = vor.u32 1.1754944e-38, %v510
        %v512 = vsel %vm509, %v511, %v507
        %v513 = vmul.f32 1.0, %v512
        %515 = vrot.lane.b32.xlu0 %v492, 64
        %v516 = vpop.permute.xlu0 %515
        %v518 = vmul.f32 %v513, %v516
        %520 = vrot.lane.b32.xlu0 %v518, 64
        %v521 = vpop.permute.xlu0 %520
        %v523 = vadd.f32 %v466, %v521
        %v524 = vtanh.pop %v523
        %v525 = vsub.f32 1.0, %v513
        %527 = vrot.lane.b32.xlu0 %v524, 96
        %v528 = vpop.permute.xlu0 %527
        %v530 = vmul.f32 %v525, %v528
        %v531 = vmul.f32 %v513, %v462
        %v532 = vadd.f32 %v530, %v531
        %534 = vset.pattern.permute.xlu0 0
        %535 = vperm.xlu0 %534, %v468
        %v536 = vpop.permute.xlu0 %535
        %v538 = vmul.f32 %v536, %v532
        %540 = vrot.lane.b32.xlu0 %v538, 96
        %v541 = vpop.permute.xlu0 %540
        %s543 = scalar_lea.vmem %s341, %s464 [#allocation7]
        %544 = vst.msk [vmem:[%s543] sm:$0x3] %vm449, %v541
        %v545 = vsub.f32 1.0, %v468
        %547 = vset.pattern.permute.xlu0 0
        %548 = vperm.xlu0 %547, %v545
        %v549 = vpop.permute.xlu0 %548
        %v551 = vmul.f32 %v549, %v462
        %v552 = vadd.f32 %v538, %v551
        %s553 = scalar_select %p362, 2, 5
        %s554 = smul.u32 %s553, 2
        %s555 = scalar_lea.vmem %s292, %s554 [#allocation2]
        %v556 = vld [vmem:[%s555] sm:$0x3]
        %s557 = scalar_lea.vmem %s1, %s554
        %v558 = vld [vmem:[%s557] sm:$0x3]
        %560 = vrot.lane.b32.xlu0 %v552, 96
        %v561 = vpop.permute.xlu0 %560
        %v562 = vsel %vm372, %v561, 0
        %564 = vmatpush.msra.mxu0 0.0
        %565 = vmatpush.msra.mxu0 0.0
        %566 = vmatpush.msra.mxu0 0.0
        %567 = vmatpush.msra.mxu0 0.0
        %568 = vmatpush.msra.mxu0 0.0
        %569 = vmatpush.msra.mxu0 0.0
        %570 = vmatpush.msra.mxu0 0.0
        %571 = vmatpush.msra.mxu0 0.0
        %572 = vmatpush.msra.mxu0 0.0
        %573 = vmatpush.msra.mxu0 0.0
        %574 = vmatpush.msra.mxu0 0.0
        %575 = vmatpush.msra.mxu0 0.0
        %576 = vmatpush.msra.mxu0 %v359
        %577 = vmatpush.msra.mxu0 %v358
        %578 = vmatpush.msra.mxu0 %v357
        %579 = vmatpush.msra.mxu0 %v356
        %580 = vmatmul.f32.gmra.mxu0 %v562
        %v581 = vpop.f32.mrf.mxu0
        %v582 = vadd.f32 %v370, %v581
        %583 = vdwg.mxu0
        %v584 = vadd.f32 %v556, %v582
        %v585 = vxor.u32 %v584, 2147483648
        %v586 = vmul.f32 %v585, 1.442695
        %v587 = vpow.pop %v586
        %v588 = vadd.f32 %v587, 1.0
        %v589 = vrcp.pop %v588
        %v590 = vmul.f32 %v588, %v589
        %v591 = vsub.f32 1.0, %v590
        %v592 = vmul.f32 %v589, %v591
        %v593 = vadd.f32 %v589, %v592
        %vm594 = vweird.f32 %v588
        %vm595 = vweird.f32 %v589
        %vm596 = vmor %vm594, %vm595
        %v597 = vsel %vm596, %v589, %v593
        %v598 = vand.u32 2147483647, %v588
        %vm599 = vcmp.eq.f32.partialorder %v598, 8.507059e+37
        %v600 = vand.u32 %v588, 2147483648
        %v601 = vor.u32 1.1754944e-38, %v600
        %v602 = vsel %vm599, %v601, %v597
        %v603 = vmul.f32 1.0, %v602
        %605 = vrot.lane.b32.xlu0 %v582, 64
        %v606 = vpop.permute.xlu0 %605
        %v608 = vmul.f32 %v603, %v606
        %610 = vrot.lane.b32.xlu0 %v608, 64
        %v611 = vpop.permute.xlu0 %610
        %v613 = vadd.f32 %v556, %v611
        %v614 = vtanh.pop %v613
        %v615 = vsub.f32 1.0, %v603
        %617 = vrot.lane.b32.xlu0 %v614, 96
        %v618 = vpop.permute.xlu0 %617
        %v620 = vmul.f32 %v615, %v618
        %v621 = vmul.f32 %v603, %v552
        %v622 = vadd.f32 %v620, %v621
        %624 = vset.pattern.permute.xlu0 0
        %625 = vperm.xlu0 %624, %v558
        %v626 = vpop.permute.xlu0 %625
        %v628 = vmul.f32 %v626, %v622
        %630 = vrot.lane.b32.xlu0 %v628, 96
        %v631 = vpop.permute.xlu0 %630
        %s633 = scalar_lea.vmem %s341, %s554 [#allocation7]
        %634 = vst.msk [vmem:[%s633] sm:$0x3] %vm449, %v631
        %v635 = vsub.f32 1.0, %v558
        %637 = vset.pattern.permute.xlu0 0
        %638 = vperm.xlu0 %637, %v635
        %v639 = vpop.permute.xlu0 %638
        %v641 = vmul.f32 %v639, %v552
        %v642 = vadd.f32 %v628, %v641
        %s643 = scalar_select %p362, 3, 4
        %s644 = smul.u32 %s643, 2
        %s645 = scalar_lea.vmem %s292, %s644 [#allocation2]
        %v646 = vld [vmem:[%s645] sm:$0x3]
        %s647 = scalar_lea.vmem %s1, %s644
        %v648 = vld [vmem:[%s647] sm:$0x3]
        %650 = vrot.lane.b32.xlu0 %v642, 96
        %v651 = vpop.permute.xlu0 %650
        %v652 = vsel %vm372, %v651, 0
        %654 = vmatpush.msra.mxu0 0.0
        %655 = vmatpush.msra.mxu0 0.0
        %656 = vmatpush.msra.mxu0 0.0
        %657 = vmatpush.msra.mxu0 0.0
        %658 = vmatpush.msra.mxu0 0.0
        %659 = vmatpush.msra.mxu0 0.0
        %660 = vmatpush.msra.mxu0 0.0
        %661 = vmatpush.msra.mxu0 0.0
        %662 = vmatpush.msra.mxu0 0.0
        %663 = vmatpush.msra.mxu0 0.0
        %664 = vmatpush.msra.mxu0 0.0
        %665 = vmatpush.msra.mxu0 0.0
        %666 = vmatpush.msra.mxu0 %v359
        %667 = vmatpush.msra.mxu0 %v358
        %668 = vmatpush.msra.mxu0 %v357
        %669 = vmatpush.msra.mxu0 %v356
        %670 = vmatmul.f32.gmra.mxu0 %v652
        %v671 = vpop.f32.mrf.mxu0
        %v672 = vadd.f32 %v370, %v671
        %673 = vdwg.mxu0
        %v674 = vadd.f32 %v646, %v672
        %v675 = vxor.u32 %v674, 2147483648
        %v676 = vmul.f32 %v675, 1.442695
        %v677 = vpow.pop %v676
        %v678 = vadd.f32 %v677, 1.0
        %v679 = vrcp.pop %v678
        %v680 = vmul.f32 %v678, %v679
        %v681 = vsub.f32 1.0, %v680
        %v682 = vmul.f32 %v679, %v681
        %v683 = vadd.f32 %v679, %v682
        %vm684 = vweird.f32 %v678
        %vm685 = vweird.f32 %v679
        %vm686 = vmor %vm684, %vm685
        %v687 = vsel %vm686, %v679, %v683
        %v688 = vand.u32 2147483647, %v678
        %vm689 = vcmp.eq.f32.partialorder %v688, 8.507059e+37
        %v690 = vand.u32 %v678, 2147483648
        %v691 = vor.u32 1.1754944e-38, %v690
        %v692 = vsel %vm689, %v691, %v687
        %v693 = vmul.f32 1.0, %v692
        %695 = vrot.lane.b32.xlu0 %v672, 64
        %v696 = vpop.permute.xlu0 %695
        %v698 = vmul.f32 %v693, %v696
        %700 = vrot.lane.b32.xlu0 %v698, 64
        %v701 = vpop.permute.xlu0 %700
        %v703 = vadd.f32 %v646, %v701
        %v704 = vtanh.pop %v703
        %v705 = vsub.f32 1.0, %v693
        %707 = vrot.lane.b32.xlu0 %v704, 96
        %v708 = vpop.permute.xlu0 %707
        %v710 = vmul.f32 %v705, %v708
        %v711 = vmul.f32 %v693, %v642
        %v712 = vadd.f32 %v710, %v711
        %714 = vset.pattern.permute.xlu0 0
        %715 = vperm.xlu0 %714, %v648
        %v716 = vpop.permute.xlu0 %715
        %v718 = vmul.f32 %v716, %v712
        %720 = vrot.lane.b32.xlu0 %v718, 96
        %v721 = vpop.permute.xlu0 %720
        %s723 = scalar_lea.vmem %s341, %s644 [#allocation7]
        %724 = vst.msk [vmem:[%s723] sm:$0x3] %vm449, %v721
        %v725 = vsub.f32 1.0, %v648
        %727 = vset.pattern.permute.xlu0 0
        %728 = vperm.xlu0 %727, %v725
        %v729 = vpop.permute.xlu0 %728
        %v731 = vmul.f32 %v729, %v642
        %v732 = vadd.f32 %v718, %v731
        %s733 = scalar_select %p362, 4, 3
        %s734 = smul.u32 %s733, 2
        %s735 = scalar_lea.vmem %s292, %s734 [#allocation2]
        %v736 = vld [vmem:[%s735] sm:$0x3]
        %s737 = scalar_lea.vmem %s1, %s734
        %v738 = vld [vmem:[%s737] sm:$0x3]
        %740 = vrot.lane.b32.xlu0 %v732, 96
        %v741 = vpop.permute.xlu0 %740
        %v742 = vsel %vm372, %v741, 0
        %744 = vmatpush.msra.mxu0 0.0
        %745 = vmatpush.msra.mxu0 0.0
        %746 = vmatpush.msra.mxu0 0.0
        %747 = vmatpush.msra.mxu0 0.0
        %748 = vmatpush.msra.mxu0 0.0
        %749 = vmatpush.msra.mxu0 0.0
        %750 = vmatpush.msra.mxu0 0.0
        %751 = vmatpush.msra.mxu0 0.0
        %752 = vmatpush.msra.mxu0 0.0
        %753 = vmatpush.msra.mxu0 0.0
        %754 = vmatpush.msra.mxu0 0.0
        %755 = vmatpush.msra.mxu0 0.0
        %756 = vmatpush.msra.mxu0 %v359
        %757 = vmatpush.msra.mxu0 %v358
        %758 = vmatpush.msra.mxu0 %v357
        %759 = vmatpush.msra.mxu0 %v356
        %760 = vmatmul.f32.gmra.mxu0 %v742
        %v761 = vpop.f32.mrf.mxu0
        %v762 = vadd.f32 %v370, %v761
        %763 = vdwg.mxu0
        %v764 = vadd.f32 %v736, %v762
        %v765 = vxor.u32 %v764, 2147483648
        %v766 = vmul.f32 %v765, 1.442695
        %v767 = vpow.pop %v766
        %v768 = vadd.f32 %v767, 1.0
        %v769 = vrcp.pop %v768
        %v770 = vmul.f32 %v768, %v769
        %v771 = vsub.f32 1.0, %v770
        %v772 = vmul.f32 %v769, %v771
        %v773 = vadd.f32 %v769, %v772
        %vm774 = vweird.f32 %v768
        %vm775 = vweird.f32 %v769
        %vm776 = vmor %vm774, %vm775
        %v777 = vsel %vm776, %v769, %v773
        %v778 = vand.u32 2147483647, %v768
        %vm779 = vcmp.eq.f32.partialorder %v778, 8.507059e+37
        %v780 = vand.u32 %v768, 2147483648
        %v781 = vor.u32 1.1754944e-38, %v780
        %v782 = vsel %vm779, %v781, %v777
        %v783 = vmul.f32 1.0, %v782
        %785 = vrot.lane.b32.xlu0 %v762, 64
        %v786 = vpop.permute.xlu0 %785
        %v788 = vmul.f32 %v783, %v786
        %790 = vrot.lane.b32.xlu0 %v788, 64
        %v791 = vpop.permute.xlu0 %790
        %v793 = vadd.f32 %v736, %v791
        %v794 = vtanh.pop %v793
        %v795 = vsub.f32 1.0, %v783
        %797 = vrot.lane.b32.xlu0 %v794, 96
        %v798 = vpop.permute.xlu0 %797
        %v800 = vmul.f32 %v795, %v798
        %v801 = vmul.f32 %v783, %v732
        %v802 = vadd.f32 %v800, %v801
        %804 = vset.pattern.permute.xlu0 0
        %805 = vperm.xlu0 %804, %v738
        %v806 = vpop.permute.xlu0 %805
        %v808 = vmul.f32 %v806, %v802
        %810 = vrot.lane.b32.xlu0 %v808, 96
        %v811 = vpop.permute.xlu0 %810
        %s813 = scalar_lea.vmem %s341, %s734 [#allocation7]
        %814 = vst.msk [vmem:[%s813] sm:$0x3] %vm449, %v811
        %v815 = vsub.f32 1.0, %v738
        %817 = vset.pattern.permute.xlu0 0
        %818 = vperm.xlu0 %817, %v815
        %v819 = vpop.permute.xlu0 %818
        %v821 = vmul.f32 %v819, %v732
        %v822 = vadd.f32 %v808, %v821
        %s823 = scalar_select %p362, 5, 2
        %s824 = smul.u32 %s823, 2
        %s825 = scalar_lea.vmem %s292, %s824 [#allocation2]
        %v826 = vld [vmem:[%s825] sm:$0x3]
        %s827 = scalar_lea.vmem %s1, %s824
        %v828 = vld [vmem:[%s827] sm:$0x3]
        %830 = vrot.lane.b32.xlu0 %v822, 96
        %v831 = vpop.permute.xlu0 %830
        %v832 = vsel %vm372, %v831, 0
        %834 = vmatpush.msra.mxu0 0.0
        %835 = vmatpush.msra.mxu0 0.0
        %836 = vmatpush.msra.mxu0 0.0
        %837 = vmatpush.msra.mxu0 0.0
        %838 = vmatpush.msra.mxu0 0.0
        %839 = vmatpush.msra.mxu0 0.0
        %840 = vmatpush.msra.mxu0 0.0
        %841 = vmatpush.msra.mxu0 0.0
        %842 = vmatpush.msra.mxu0 0.0
        %843 = vmatpush.msra.mxu0 0.0
        %844 = vmatpush.msra.mxu0 0.0
        %845 = vmatpush.msra.mxu0 0.0
        %846 = vmatpush.msra.mxu0 %v359
        %847 = vmatpush.msra.mxu0 %v358
        %848 = vmatpush.msra.mxu0 %v357
        %849 = vmatpush.msra.mxu0 %v356
        %850 = vmatmul.f32.gmra.mxu0 %v832
        %v851 = vpop.f32.mrf.mxu0
        %v852 = vadd.f32 %v370, %v851
        %853 = vdwg.mxu0
        %v854 = vadd.f32 %v826, %v852
        %v855 = vxor.u32 %v854, 2147483648
        %v856 = vmul.f32 %v855, 1.442695
        %v857 = vpow.pop %v856
        %v858 = vadd.f32 %v857, 1.0
        %v859 = vrcp.pop %v858
        %v860 = vmul.f32 %v858, %v859
        %v861 = vsub.f32 1.0, %v860
        %v862 = vmul.f32 %v859, %v861
        %v863 = vadd.f32 %v859, %v862
        %vm864 = vweird.f32 %v858
        %vm865 = vweird.f32 %v859
        %vm866 = vmor %vm864, %vm865
        %v867 = vsel %vm866, %v859, %v863
        %v868 = vand.u32 2147483647, %v858
        %vm869 = vcmp.eq.f32.partialorder %v868, 8.507059e+37
        %v870 = vand.u32 %v858, 2147483648
        %v871 = vor.u32 1.1754944e-38, %v870
        %v872 = vsel %vm869, %v871, %v867
        %v873 = vmul.f32 1.0, %v872
        %875 = vrot.lane.b32.xlu0 %v852, 64
        %v876 = vpop.permute.xlu0 %875
        %v878 = vmul.f32 %v873, %v876
        %880 = vrot.lane.b32.xlu0 %v878, 64
        %v881 = vpop.permute.xlu0 %880
        %v883 = vadd.f32 %v826, %v881
        %v884 = vtanh.pop %v883
        %v885 = vsub.f32 1.0, %v873
        %887 = vrot.lane.b32.xlu0 %v884, 96
        %v888 = vpop.permute.xlu0 %887
        %v890 = vmul.f32 %v885, %v888
        %v891 = vmul.f32 %v873, %v822
        %v892 = vadd.f32 %v890, %v891
        %894 = vset.pattern.permute.xlu0 0
        %895 = vperm.xlu0 %894, %v828
        %v896 = vpop.permute.xlu0 %895
        %v898 = vmul.f32 %v896, %v892
        %900 = vrot.lane.b32.xlu0 %v898, 96
        %v901 = vpop.permute.xlu0 %900
        %s903 = scalar_lea.vmem %s341, %s824 [#allocation7]
        %904 = vst.msk [vmem:[%s903] sm:$0x3] %vm449, %v901
        %v905 = vsub.f32 1.0, %v828
        %907 = vset.pattern.permute.xlu0 0
        %908 = vperm.xlu0 %907, %v905
        %v909 = vpop.permute.xlu0 %908
        %v911 = vmul.f32 %v909, %v822
        %v912 = vadd.f32 %v898, %v911
        %s913 = scalar_select %p362, 6, 1
        %s914 = smul.u32 %s913, 2
        %s915 = scalar_lea.vmem %s292, %s914 [#allocation2]
        %v916 = vld [vmem:[%s915] sm:$0x3]
        %s917 = scalar_lea.vmem %s1, %s914
        %v918 = vld [vmem:[%s917] sm:$0x3]
        %920 = vrot.lane.b32.xlu0 %v912, 96
        %v921 = vpop.permute.xlu0 %920
        %v922 = vsel %vm372, %v921, 0
        %924 = vmatpush.msra.mxu0 0.0
        %925 = vmatpush.msra.mxu0 0.0
        %926 = vmatpush.msra.mxu0 0.0
        %927 = vmatpush.msra.mxu0 0.0
        %928 = vmatpush.msra.mxu0 0.0
        %929 = vmatpush.msra.mxu0 0.0
        %930 = vmatpush.msra.mxu0 0.0
        %931 = vmatpush.msra.mxu0 0.0
        %932 = vmatpush.msra.mxu0 0.0
        %933 = vmatpush.msra.mxu0 0.0
        %934 = vmatpush.msra.mxu0 0.0
        %935 = vmatpush.msra.mxu0 0.0
        %936 = vmatpush.msra.mxu0 %v359
        %937 = vmatpush.msra.mxu0 %v358
        %938 = vmatpush.msra.mxu0 %v357
        %939 = vmatpush.msra.mxu0 %v356
        %940 = vmatmul.f32.gmra.mxu0 %v922
        %v941 = vpop.f32.mrf.mxu0
        %v942 = vadd.f32 %v370, %v941
        %943 = vdwg.mxu0
        %v944 = vadd.f32 %v916, %v942
        %v945 = vxor.u32 %v944, 2147483648
        %v946 = vmul.f32 %v945, 1.442695
        %v947 = vpow.pop %v946
        %v948 = vadd.f32 %v947, 1.0
        %v949 = vrcp.pop %v948
        %v950 = vmul.f32 %v948, %v949
        %v951 = vsub.f32 1.0, %v950
        %v952 = vmul.f32 %v949, %v951
        %v953 = vadd.f32 %v949, %v952
        %vm954 = vweird.f32 %v948
        %vm955 = vweird.f32 %v949
        %vm956 = vmor %vm954, %vm955
        %v957 = vsel %vm956, %v949, %v953
        %v958 = vand.u32 2147483647, %v948
        %vm959 = vcmp.eq.f32.partialorder %v958, 8.507059e+37
        %v960 = vand.u32 %v948, 2147483648
        %v961 = vor.u32 1.1754944e-38, %v960
        %v962 = vsel %vm959, %v961, %v957
        %v963 = vmul.f32 1.0, %v962
        %965 = vrot.lane.b32.xlu0 %v942, 64
        %v966 = vpop.permute.xlu0 %965
        %v968 = vmul.f32 %v963, %v966
        %970 = vrot.lane.b32.xlu0 %v968, 64
        %v971 = vpop.permute.xlu0 %970
        %v973 = vadd.f32 %v916, %v971
        %v974 = vtanh.pop %v973
        %v975 = vsub.f32 1.0, %v963
        %977 = vrot.lane.b32.xlu0 %v974, 96
        %v978 = vpop.permute.xlu0 %977
        %v980 = vmul.f32 %v975, %v978
        %v981 = vmul.f32 %v963, %v912
        %v982 = vadd.f32 %v980, %v981
        %984 = vset.pattern.permute.xlu0 0
        %985 = vperm.xlu0 %984, %v918
        %v986 = vpop.permute.xlu0 %985
        %v988 = vmul.f32 %v986, %v982
        %990 = vrot.lane.b32.xlu0 %v988, 96
        %v991 = vpop.permute.xlu0 %990
        %s993 = scalar_lea.vmem %s341, %s914 [#allocation7]
        %994 = vst.msk [vmem:[%s993] sm:$0x3] %vm449, %v991
        %v995 = vsub.f32 1.0, %v918
        %997 = vset.pattern.permute.xlu0 0
        %998 = vperm.xlu0 %997, %v995
        %v999 = vpop.permute.xlu0 %998
        %v1001 = vmul.f32 %v999, %v912
        %v1002 = vadd.f32 %v988, %v1001
        %s1003 = scalar_select %p362, 7, 0
        %s1004 = smul.u32 %s1003, 2
        %s1005 = scalar_lea.vmem %s292, %s1004 [#allocation2]
        %v1006 = vld [vmem:[%s1005] sm:$0x3]
        %s1007 = scalar_lea.vmem %s1, %s1004
        %v1008 = vld [vmem:[%s1007] sm:$0x3]
        %1010 = vrot.lane.b32.xlu0 %v1002, 96
        %v1011 = vpop.permute.xlu0 %1010
        %v1012 = vsel %vm372, %v1011, 0
        %1014 = vmatpush.msra.mxu0 0.0
        %1015 = vmatpush.msra.mxu0 0.0
        %1016 = vmatpush.msra.mxu0 0.0
        %1017 = vmatpush.msra.mxu0 0.0
        %1018 = vmatpush.msra.mxu0 0.0
        %1019 = vmatpush.msra.mxu0 0.0
        %1020 = vmatpush.msra.mxu0 0.0
        %1021 = vmatpush.msra.mxu0 0.0
        %1022 = vmatpush.msra.mxu0 0.0
        %1023 = vmatpush.msra.mxu0 0.0
        %1024 = vmatpush.msra.mxu0 0.0
        %1025 = vmatpush.msra.mxu0 0.0
        %1026 = vmatpush.msra.mxu0 %v359
        %1027 = vmatpush.msra.mxu0 %v358
        %1028 = vmatpush.msra.mxu0 %v357
        %1029 = vmatpush.msra.mxu0 %v356
        %1030 = vmatmul.f32.gmra.mxu0 %v1012
        %v1031 = vpop.f32.mrf.mxu0
        %v1032 = vadd.f32 %v370, %v1031
        %1033 = vdwg.mxu0
        %v1034 = vadd.f32 %v1006, %v1032
        %v1035 = vxor.u32 %v1034, 2147483648
        %v1036 = vmul.f32 %v1035, 1.442695
        %v1037 = vpow.pop %v1036
        %v1038 = vadd.f32 %v1037, 1.0
        %v1039 = vrcp.pop %v1038
        %v1040 = vmul.f32 %v1038, %v1039
        %v1041 = vsub.f32 1.0, %v1040
        %v1042 = vmul.f32 %v1039, %v1041
        %v1043 = vadd.f32 %v1039, %v1042
        %vm1044 = vweird.f32 %v1038
        %vm1045 = vweird.f32 %v1039
        %vm1046 = vmor %vm1044, %vm1045
        %v1047 = vsel %vm1046, %v1039, %v1043
        %v1048 = vand.u32 2147483647, %v1038
        %vm1049 = vcmp.eq.f32.partialorder %v1048, 8.507059e+37
        %v1050 = vand.u32 %v1038, 2147483648
        %v1051 = vor.u32 1.1754944e-38, %v1050
        %v1052 = vsel %vm1049, %v1051, %v1047
        %v1053 = vmul.f32 1.0, %v1052
        %1055 = vrot.lane.b32.xlu0 %v1032, 64
        %v1056 = vpop.permute.xlu0 %1055
        %v1058 = vmul.f32 %v1053, %v1056
        %1060 = vrot.lane.b32.xlu0 %v1058, 64
        %v1061 = vpop.permute.xlu0 %1060
        %v1063 = vadd.f32 %v1006, %v1061
        %v1064 = vtanh.pop %v1063
        %v1065 = vsub.f32 1.0, %v1053
        %1067 = vrot.lane.b32.xlu0 %v1064, 96
        %v1068 = vpop.permute.xlu0 %1067
        %v1070 = vmul.f32 %v1065, %v1068
        %v1071 = vmul.f32 %v1053, %v1002
        %v1072 = vadd.f32 %v1070, %v1071
        %1074 = vset.pattern.permute.xlu0 0
        %1075 = vperm.xlu0 %1074, %v1008
        %v1076 = vpop.permute.xlu0 %1075
        %v1078 = vmul.f32 %v1076, %v1072
        %1080 = vrot.lane.b32.xlu0 %v1078, 96
        %v1081 = vpop.permute.xlu0 %1080
        %s1083 = scalar_lea.vmem %s341, %s1004 [#allocation7]
        %1084 = vst.msk [vmem:[%s1083] sm:$0x3] %vm449, %v1081
        %v1085 = vsub.f32 1.0, %v1008
        %1087 = vset.pattern.permute.xlu0 0
        %1088 = vperm.xlu0 %1087, %v1085
        %v1089 = vpop.permute.xlu0 %1088
        %v1091 = vmul.f32 %v1089, %v1002
        %v1092 = vadd.f32 %v1078, %v1091
        %1094 = vrot.lane.b32.xlu0 %v1092, 96
        %v1095 = vpop.permute.xlu0 %1094
        %1097 = vst.msk [vmem:[%s348] sm:$0x3] %vm449, %v1095
        %s1098 = sand.u32 %s163, 1
        %s1099 = scalar_lea.sflag [#allocation4], %s1098
        %s1100 = sand.u32 %s163, 1
        %s1101 = smul.addr %s1100, 16
        %s1102 = scalar_lea.vmem [#allocation7], %s1101
        %s1103 = sand.u32 %s189, 1
        %s1104 = scalar_lea.sflag [#allocation9], %s1103
        %s1105 = sand.u32 %s189, 1
        %s1106 = smul.addr %s1105, 2
        %s1107 = scalar_lea.vmem [#allocation8], %s1106
        // Predicated region
        $region49: #{tpu_custom_call.1} parent=39 // pred_check
          %p1108 = pneg %p173
        $region50: #{tpu_custom_call.1} parent=39 // pred_check_branch
          %1110 = sbr.rel (%p1108) target = $region52
        $region51: #{tpu_custom_call.1} parent=39 // pred_region
          %1112 = vsyncadd %s1099, 0
          %s1113 = smul.addr %s30, 8
          %s1114 = smul.addr %s1113, 2
          %s1115 = scalar_lea.hbm %s5, %s1114
          %s1116 = sshll.u32 %s1102, 4
          %s1117 = int_to_ptr.vmem [resolvable:$true] %s1116
          %s1118 = sshll.u32 %s1115, 4
          %s1119 = int_to_ptr.hbm [resolvable:$true] %s1118
          %1124 = dma.vmem_to_hbm [thread:$0]  %s1117, 256, %s1119, %s1099, 32, 32, 2
        $region52: #{tpu_custom_call.1} parent=39 // pred_fallthru
          _
        // Predicated region
        $region53: #{tpu_custom_call.1} parent=39 // pred_check
          %p1125 = pneg %p199
        $region54: #{tpu_custom_call.1} parent=39 // pred_check_branch
          %1127 = sbr.rel (%p1125) target = $region56
        $region55: #{tpu_custom_call.1} parent=39 // pred_region
          %1129 = vsyncadd %s1104, 0
          %s1130 = smul.addr %s30, 2
          %s1131 = scalar_lea.hbm %s6, %s1130
          %s1133 = sshll.u32 %s1107, 4
          %s1134 = int_to_ptr.vmem [resolvable:$true] %s1133
          %s1135 = sshll.u32 %s1131, 4
          %s1136 = int_to_ptr.hbm [resolvable:$true] %s1135
          %1138 = dma.vmem_to_hbm [thread:$0]  %s1134, 32, %s1136, %s1104
        $region56: #{tpu_custom_call.1} parent=39 // pred_fallthru
          _
      $region40: #{tpu_custom_call.1} parent=5 // pred_fallthru
        _
      %p1139 = scmp.le.s32.totalorder 2, %s25
      // Predicated region
      $region57: #{tpu_custom_call.1} parent=5 // pred_check
        %p1140 = pneg %p1139
      $region58: #{tpu_custom_call.1} parent=5 // pred_check_branch
        %1142 = sbr.rel (%p1140) target = $region60
      $region59: #{tpu_custom_call.1} parent=5 // pred_region
        %s1143 = ssub.s32 %s25, 2
        // Predicated region
        $region61: #{tpu_custom_call.1} parent=59 // pred_check
          %p1144 = pneg %p179
        $region62: #{tpu_custom_call.1} parent=59 // pred_check_branch
          %1146 = sbr.rel (%p1144) target = $region64
        $region63: #{tpu_custom_call.1} parent=59 // pred_region
          %s1147 = sand.u32 %s164, 1
          %s1148 = scalar_lea.sflag [#allocation4], %s1147
          %s1149 = sand.u32 %s164, 1
          %s1150 = smul.addr %s1149, 16
          %s1151 = scalar_lea.vmem [#allocation7], %s1150
          %1153 = dma.done %s1148, 256
        $region64: #{tpu_custom_call.1} parent=59 // pred_fallthru
          _
        // Predicated region
        $region65: #{tpu_custom_call.1} parent=59 // pred_check
          %p1154 = pneg %p205
        $region66: #{tpu_custom_call.1} parent=59 // pred_check_branch
          %1156 = sbr.rel (%p1154) target = $region68
        $region67: #{tpu_custom_call.1} parent=59 // pred_region
          %s1157 = sand.u32 %s190, 1
          %s1158 = scalar_lea.sflag [#allocation9], %s1157
          %s1159 = sand.u32 %s190, 1
          %s1160 = smul.addr %s1159, 2
          %s1161 = scalar_lea.vmem [#allocation8], %s1160
          %1163 = dma.done %s1158, 32
        $region68: #{tpu_custom_call.1} parent=59 // pred_fallthru
          _
      $region60: #{tpu_custom_call.1} parent=5 // pred_fallthru
        _
    $region6: #{tpu_custom_call.1} parent=1 // loop_footer
      %s29 = sadd.s32 1, %s25
    $region7: #{tpu_custom_call.1} parent=1 // loop_footer_branch
      %24 = sbr.rel target = $region3
    $region8: #{tpu_custom_call.1} parent=1 // loop_exit
      _
    %1164 = vsyncpa [#allocation3], 1
    %s1165 = scalar_lea.sflag [#allocation3], 1
    %1166 = vsyncpa %s1165, 1
    %1167 = vsyncpa [#allocation6], 1
    %s1168 = scalar_lea.sflag [#allocation6], 1
    %1169 = vsyncpa %s1168, 1
    %1170 = vsyncpa [#allocation4], 1
    %s1171 = scalar_lea.sflag [#allocation4], 1
    %1172 = vsyncpa %s1171, 1
    %1173 = vsyncpa [#allocation9], 1
    %s1174 = scalar_lea.sflag [#allocation9], 1
    %1175 = vsyncpa %s1174, 1

</llo_original>
